<compile_context>
chip_gen: v5e
topology: v5e:2x2
jax: 0.10.0
libtpu: 0.0.40
codegen_flags: <defaults>
</compile_context>

<pallas_src>
import functools

import jax
import jax.numpy as jnp
from jax.experimental import pallas as pl
from jax.experimental.pallas import tpu as pltpu


HIDDEN = 128        # hidden width of each (actor / critic) MLP
HEAD_LANES = 128    # packed head width: actor logits + critic value + padding
MAX_TILE_B = 512    # upper bound on batch rows per grid step


def _round_up(n, m):
    return ((n + m - 1) // m) * m


def _choose_tile(batch, max_tile=MAX_TILE_B):
    """Largest batch tile (multiple of 8, <= max_tile) keeping the grid >= 2.

    The kernel is per-step-overhead bound (not VMEM/MXU/HBM bound), so bigger
    tiles win; keeping at least two grid steps preserves the megacore split on
    v7x via dimension_semantics=("parallel",).
    """
    half = -(-batch // 2)                      # ceil(batch / 2)
    return max(8, min(max_tile, _round_up(half, 8)))


def _act_dtype_for_backend():
    """bf16 tanh on v6e/v7x (bf16 EUP); f32 on v5e / CPU / unknown."""
    try:
        kind = jax.devices()[0].device_kind.lower()
    except Exception:
        return jnp.float32
    if "v6" in kind or "v7" in kind or "7x" in kind:
        return jnp.bfloat16
    return jnp.float32


def _policy_kernel(x_ref, g_ref, w1_ref, w2_ref, wh_ref, b_ref, out_ref, *,
                   n_actions, act_dtype):
    """One batch tile of the fused actor+critic forward pass.

    Packed weights (built in pack_params):
      w1 [obs, 2H]   = concat(actor_l1, critic_l1) along output lanes
      w2 [2H, 2H]    = block-diag(actor_l2, critic_l2)
      wh [2H, 128]   = actor head in lanes 0..A-1, critic head in lane A
      b  [1, 4H+128] = concat(b1, b2, bh)
    g_ref: Gumbel(0,1) noise for this tile (wrapper-generated).
    Output [tile_b, 128] f32: lane 0 = action (float-encoded), lane 1 = value,
    lane 2 = log_prob, remaining lanes 0.
    """
    a = n_actions
    h2w = w2_ref.shape[0]                      # 2*H
    b1 = b_ref[:, :h2w]
    b2 = b_ref[:, h2w:2 * h2w]
    bh = b_ref[:, 2 * h2w:]

    x = x_ref[...]                             # already bf16 (cast in wrapper)

    # ---- fused actor/critic trunk: 3 MXU matmuls, bf16 in, f32 accumulate ----
    h1 = jnp.tanh((jnp.dot(x, w1_ref[...],
                           preferred_element_type=jnp.float32) + b1
                   ).astype(act_dtype))
    h2 = jnp.tanh((jnp.dot(h1.astype(jnp.bfloat16), w2_ref[...],
                           preferred_element_type=jnp.float32) + b2
                   ).astype(act_dtype))
    head = jnp.dot(h2.astype(jnp.bfloat16), wh_ref[...],
                   preferred_element_type=jnp.float32) + bh

    tb, lanes = head.shape
    col = jax.lax.broadcasted_iota(jnp.int32, (tb, lanes), 1)
    valid = col < a
    # Padded lanes -> very negative so max / logsumexp / argmax ignore them.
    logits = jnp.where(valid, head, jnp.float32(-1e30))

    # ---- log-softmax pieces (no [B, A] log_probs_all materialized) ----
    m = jnp.max(logits, axis=-1, keepdims=True)
    z = logits - m
    lse = jnp.log(jnp.sum(jnp.exp(z), axis=-1, keepdims=True))

    # ---- Gumbel-max categorical sample (noise supplied by the wrapper) ----
    pert = jnp.where(valid, logits + g_ref[...], jnp.float32(-1e30))
    pmax = jnp.max(pert, axis=-1, keepdims=True)
    action = jnp.min(jnp.where(pert == pmax, col, jnp.int32(lanes)),
                     axis=-1, keepdims=True)          # [tb, 1] int32

    onehot = col == action
    z_sel = jnp.sum(jnp.where(onehot, z, jnp.float32(0.0)),
                    axis=-1, keepdims=True)
    log_prob = z_sel - lse                            # [tb, 1]

    # critic value lives in lane `a` of the packed head
    value = jnp.sum(jnp.where(col == a, head, jnp.float32(0.0)),
                    axis=-1, keepdims=True)

    # ---- lane-dense packed output: one unmasked [tile_b, 128] store ----
    # TODO(synk): for very large rollout batches a [3, B] output layout would
    # cut writeback ~40x; kept [B, 128] here since this kernel is
    # per-step-overhead bound at PPO-sized batches.
    act_f = action.astype(jnp.float32)  # exact: action < 128 << 2**24
    packed = jnp.where(col == 0, act_f,
             jnp.where(col == 1, value,
             jnp.where(col == 2, log_prob, jnp.float32(0.0))))
    out_ref[...] = packed


def init_params(key, obs_dim, n_actions, hidden=HIDDEN):
    """He-style init matching the nn.Linear shapes (weights as [in, out])."""
    ks = jax.random.split(key, 6)

    def he(k, fan_in, fan_out):
        return (jax.random.normal(k, (fan_in, fan_out), jnp.float32)
                * jnp.sqrt(2.0 / fan_in))

    return {
        # actor
        "w1a": he(ks[0], obs_dim, hidden), "b1a": jnp.zeros((1, hidden), jnp.float32),
        "w2a": he(ks[1], hidden, hidden),  "b2a": jnp.zeros((1, hidden), jnp.float32),
        "w3a": he(ks[2], hidden, n_actions), "b3a": jnp.zeros((1, n_actions), jnp.float32),
        # critic
        "w1c": he(ks[3], obs_dim, hidden), "b1c": jnp.zeros((1, hidden), jnp.float32),
        "w2c": he(ks[4], hidden, hidden),  "b2c": jnp.zeros((1, hidden), jnp.float32),
        "w3c": he(ks[5], hidden, 1),       "b3c": jnp.zeros((1, 1), jnp.float32),
    }


def pack_params(p, n_actions, hidden=HIDDEN):
    """Fuse actor/critic layers into 3 wide bf16 matmul weights + 1 f32 bias row."""
    assert n_actions < HEAD_LANES, "critic value lane must fit next to logits"
    H = hidden
    W1 = jnp.concatenate([p["w1a"], p["w1c"]], axis=1)             # [obs, 2H]
    W2 = jnp.zeros((2 * H, 2 * H), jnp.float32)
    W2 = W2.at[:H, :H].set(p["w2a"]).at[H:, H:].set(p["w2c"])      # block-diag
    Wh = jnp.zeros((2 * H, HEAD_LANES), jnp.float32)
    Wh = Wh.at[:H, :n_actions].set(p["w3a"])
    Wh = Wh.at[H:, n_actions:n_actions + 1].set(p["w3c"])

    b1 = jnp.concatenate([p["b1a"], p["b1c"]], axis=1)             # [1, 2H]
    b2 = jnp.concatenate([p["b2a"], p["b2c"]], axis=1)             # [1, 2H]
    bh = jnp.zeros((1, HEAD_LANES), jnp.float32)
    bh = bh.at[:, :n_actions].set(p["b3a"])
    bh = bh.at[:, n_actions:n_actions + 1].set(p["b3c"])
    b_all = jnp.concatenate([b1, b2, bh], axis=1)                  # [1, 4H+128]

    return {
        "W1": W1.astype(jnp.bfloat16),
        "W2": W2.astype(jnp.bfloat16),
        "Wh": Wh.astype(jnp.bfloat16),
        "b_all": b_all,
        "n_actions": n_actions,
    }


def actor_critic_forward(x, packed_params, key, max_tile=MAX_TILE_B):
    """ActorCriticPolicy.forward: returns (actions[B], values[B,1], log_probs[B])."""
    B, obs_dim = x.shape
    A = packed_params["n_actions"]

    tile_b = _choose_tile(B, max_tile)
    Bp = _round_up(B, tile_b)
    grid = (Bp // tile_b,)

    # Gumbel(0,1) noise for the Gumbel-max categorical sample, generated
    # wrapper-side (the Mosaic hardware PRNG has no CPU/interpret lowering)
    # and streamed in one batch tile at a time.
    gumbel = jax.random.gumbel(key, (Bp, HEAD_LANES), jnp.float32)

    if Bp != B:
        x = jnp.pad(x, ((0, Bp - B), (0, 0)))
    x = x.astype(jnp.bfloat16)          # pre-cast: halves the x DMA bytes

    W1, W2, Wh = packed_params["W1"], packed_params["W2"], packed_params["Wh"]
    b_all = packed_params["b_all"]

    kernel = functools.partial(_policy_kernel, n_actions=A,
                               act_dtype=_act_dtype_for_backend())

    def pinned(shape):
        # Same block for every grid step -> DMA'd once, held VMEM-resident.
        return pl.BlockSpec(shape, lambda i: (0, 0))

    packed_out = pl.pallas_call(
        kernel,
        out_shape=jax.ShapeDtypeStruct((Bp, HEAD_LANES), jnp.float32),
        grid=grid,
        in_specs=[
            pl.BlockSpec((tile_b, obs_dim), lambda i: (i, 0)),
            pl.BlockSpec((tile_b, HEAD_LANES), lambda i: (i, 0)),
            pinned(W1.shape), pinned(W2.shape), pinned(Wh.shape),
            pinned(b_all.shape),
        ],
        out_specs=pl.BlockSpec((tile_b, HEAD_LANES), lambda i: (i, 0)),
        compiler_params=pltpu.CompilerParams(
            dimension_semantics=("parallel",)),
    )(x, gumbel, W1, W2, Wh, b_all)

    packed_out = packed_out[:B]
    actions = packed_out[:, 0].astype(jnp.int32)   # exact (small integers)
    values = packed_out[:, 1:2]
    log_probs = packed_out[:, 2]
    return actions, values, log_probs


if __name__ == "__main__":
    key = jax.random.PRNGKey(0)
    k_param, k_obs, k_noise = jax.random.split(key, 3)

    B, OBS_DIM, N_ACTIONS = 256, 16, 8   # small flat-obs discrete-action setup
    raw = init_params(k_param, OBS_DIM, N_ACTIONS)
    params = pack_params(raw, N_ACTIONS)

    obs = jax.random.normal(k_obs, (B, OBS_DIM), jnp.float32)

    actions, values, log_probs = actor_critic_forward(obs, params, k_noise)
    jax.block_until_ready((actions, values, log_probs))

    # ---- reference with the same bf16-matmul / activation-dtype path ----
    act_dtype = _act_dtype_for_backend()

    def ref_forward(x, pp, a):
        H2 = 2 * HIDDEN
        b1 = pp["b_all"][:, :H2]
        b2 = pp["b_all"][:, H2:2 * H2]
        bh = pp["b_all"][:, 2 * H2:]
        h1 = jnp.tanh((jnp.dot(x.astype(jnp.bfloat16), pp["W1"],
                               preferred_element_type=jnp.float32) + b1
                       ).astype(act_dtype))
        h2 = jnp.tanh((jnp.dot(h1.astype(jnp.bfloat16), pp["W2"],
                               preferred_element_type=jnp.float32) + b2
                       ).astype(act_dtype))
        head = jnp.dot(h2.astype(jnp.bfloat16), pp["Wh"],
                       preferred_element_type=jnp.float32) + bh
        return head[:, :a], head[:, a:a + 1]

    logits_ref, values_ref = ref_forward(obs, params, N_ACTIONS)
    logp_all_ref = jax.nn.log_softmax(logits_ref.astype(jnp.float32), axis=-1)

    # Re-derive the exact Gumbel noise the wrapper used (same key / shape).
    tile_b = _choose_tile(B)
    Bp = _round_up(B, tile_b)
    gumbel = jax.random.gumbel(k_noise, (Bp, HEAD_LANES), jnp.float32)
    ref_actions = jnp.argmax(logits_ref + gumbel[:B, :N_ACTIONS], axis=-1)

    assert actions.shape == (B,) and values.shape == (B, 1) and log_probs.shape == (B,)
    assert bool(jnp.all((actions >= 0) & (actions < N_ACTIONS)))
    assert bool(jnp.allclose(values, values_ref, atol=3e-2))
    # log_prob must be the log-softmax of the logits at the sampled action.
    logp_ref = logp_all_ref[jnp.arange(B), actions]
    assert bool(jnp.allclose(log_probs, logp_ref, atol=3e-2))
    # Same Gumbel noise -> same Gumbel-max winner (allow rare rounding ties).
    assert float(jnp.mean((actions == ref_actions).astype(jnp.float32))) > 0.95

    # TODO(synk): Adam optimizer state and train()/eval() mode flags are
    # training-side bookkeeping, not part of the forward kernel.
    print("KERNEL_OK")
</pallas_src>

<mosaic_0001>
module attributes {stable_mosaic.version = 11 : i64} {
  func.func @_policy_kernel(%arg0: i32, %arg1: memref<128x16xbf16, #tpu.memory_space<vmem>>, %arg2: memref<128x128xf32, #tpu.memory_space<vmem>>, %arg3: memref<16x256xbf16, #tpu.memory_space<vmem>>, %arg4: memref<256x256xbf16, #tpu.memory_space<vmem>>, %arg5: memref<256x128xbf16, #tpu.memory_space<vmem>>, %arg6: memref<1x640xf32, #tpu.memory_space<vmem>>, %arg7: memref<128x128xf32, #tpu.memory_space<vmem>>) attributes {dimension_semantics = [#tpu.dimension_semantics<parallel>], iteration_bounds = array<i64: 2>, scalar_prefetch = 0 : i64, scratch_operands = 0 : i64, tpu.core_type = #tpu.core_type<tc>, window_params = [{transform_indices = @transform_0, window_bounds = array<i64: 128, 16>}, {transform_indices = @transform_1, window_bounds = array<i64: 128, 128>}, {pipeline_mode = #tpu.pipeline_mode<synchronous>, transform_indices = @transform_2, window_bounds = array<i64: 16, 256>}, {pipeline_mode = #tpu.pipeline_mode<synchronous>, transform_indices = @transform_3, window_bounds = array<i64: 256, 256>}, {pipeline_mode = #tpu.pipeline_mode<synchronous>, transform_indices = @transform_4, window_bounds = array<i64: 256, 128>}, {pipeline_mode = #tpu.pipeline_mode<synchronous>, transform_indices = @transform_5, window_bounds = array<i64: 1, 640>}, {transform_indices = @transform_6, window_bounds = array<i64: 128, 128>}]} {
    %c0 = arith.constant 0 : index
    %c0_0 = arith.constant 0 : index
    %0 = vector.load %arg6[%c0, %c0_0] : memref<1x640xf32, #tpu.memory_space<vmem>>, vector<1x256xf32>
    %c0_1 = arith.constant 0 : index
    %c256 = arith.constant 256 : index
    %1 = vector.load %arg6[%c0_1, %c256] : memref<1x640xf32, #tpu.memory_space<vmem>>, vector<1x256xf32>
    %c0_2 = arith.constant 0 : index
    %c512 = arith.constant 512 : index
    %2 = vector.load %arg6[%c0_2, %c512] : memref<1x640xf32, #tpu.memory_space<vmem>>, vector<1x128xf32>
    %c0_3 = arith.constant 0 : index
    %c0_4 = arith.constant 0 : index
    %3 = vector.load %arg1[%c0_3, %c0_4] : memref<128x16xbf16, #tpu.memory_space<vmem>>, vector<128x16xbf16>
    %c0_5 = arith.constant 0 : index
    %c0_6 = arith.constant 0 : index
    %4 = vector.load %arg3[%c0_5, %c0_6] : memref<16x256xbf16, #tpu.memory_space<vmem>>, vector<16x256xbf16>
    %cst = arith.constant dense<0.000000e+00> : vector<128x256xf32>
    %5 = tpu.matmul %3, %4, %cst {dimension_numbers = #tpu.dot_dimension_numbers<[1], [0], [0], [1], [0, 0, 1, 1], [], []>} : vector<128x16xbf16>, vector<16x256xbf16>, vector<128x256xf32> -> vector<128x256xf32>
    %6 = vector.broadcast %0 : vector<1x256xf32> to vector<128x256xf32>
    %7 = arith.addf %5, %6 : vector<128x256xf32>
    %8 = math.tanh %7 : vector<128x256xf32>
    %9 = arith.truncf %8 : vector<128x256xf32> to vector<128x256xbf16>
    %c0_7 = arith.constant 0 : index
    %c0_8 = arith.constant 0 : index
    %10 = vector.load %arg4[%c0_7, %c0_8] : memref<256x256xbf16, #tpu.memory_space<vmem>>, vector<256x256xbf16>
    %cst_9 = arith.constant dense<0.000000e+00> : vector<128x256xf32>
    %11 = tpu.matmul %9, %10, %cst_9 {dimension_numbers = #tpu.dot_dimension_numbers<[1], [0], [0], [1], [0, 0, 1, 1], [], []>} : vector<128x256xbf16>, vector<256x256xbf16>, vector<128x256xf32> -> vector<128x256xf32>
    %12 = vector.broadcast %1 : vector<1x256xf32> to vector<128x256xf32>
    %13 = arith.addf %11, %12 : vector<128x256xf32>
    %14 = math.tanh %13 : vector<128x256xf32>
    %15 = arith.truncf %14 : vector<128x256xf32> to vector<128x256xbf16>
    %c0_10 = arith.constant 0 : index
    %c0_11 = arith.constant 0 : index
    %16 = vector.load %arg5[%c0_10, %c0_11] : memref<256x128xbf16, #tpu.memory_space<vmem>>, vector<256x128xbf16>
    %cst_12 = arith.constant dense<0.000000e+00> : vector<128x128xf32>
    %17 = tpu.matmul %15, %16, %cst_12 {dimension_numbers = #tpu.dot_dimension_numbers<[1], [0], [0], [1], [0, 0, 1, 1], [], []>} : vector<128x256xbf16>, vector<256x128xbf16>, vector<128x128xf32> -> vector<128x128xf32>
    %18 = vector.broadcast %2 : vector<1x128xf32> to vector<128x128xf32>
    %19 = arith.addf %17, %18 : vector<128x128xf32>
    %20 = tpu.iota {dimensions = array<i32: 1>} : vector<128x128xi32>
    %c8_i32 = arith.constant 8 : i32
    %21 = vector.broadcast %c8_i32 : i32 to vector<128x128xi32>
    %22 = arith.cmpi slt, %20, %21 : vector<128x128xi32>
    %cst_13 = arith.constant -1.000000e+30 : f32
    %23 = vector.broadcast %cst_13 : f32 to vector<128x128xf32>
    %24 = arith.select %22, %19, %23 : vector<128x128xi1>, vector<128x128xf32>
    %cst_14 = arith.constant dense<0xFF800000> : vector<128xf32>
    %25 = vector.multi_reduction <maximumf>, %24, %cst_14 [1] : vector<128x128xf32> to vector<128xf32>
    %26 = vector.shape_cast %25 : vector<128xf32> to vector<128x1xf32>
    %27 = vector.broadcast %26 : vector<128x1xf32> to vector<128x128xf32>
    %28 = arith.subf %24, %27 : vector<128x128xf32>
    %29 = math.exp %28 : vector<128x128xf32>
    %cst_15 = arith.constant dense<0.000000e+00> : vector<128xf32>
    %30 = vector.multi_reduction <add>, %29, %cst_15 [1] : vector<128x128xf32> to vector<128xf32>
    %31 = vector.shape_cast %30 : vector<128xf32> to vector<128x1xf32>
    %32 = math.log %31 : vector<128x1xf32>
    %c0_16 = arith.constant 0 : index
    %c0_17 = arith.constant 0 : index
    %33 = vector.load %arg2[%c0_16, %c0_17] : memref<128x128xf32, #tpu.memory_space<vmem>>, vector<128x128xf32>
    %34 = arith.addf %24, %33 : vector<128x128xf32>
    %cst_18 = arith.constant -1.000000e+30 : f32
    %35 = vector.broadcast %cst_18 : f32 to vector<128x128xf32>
    %36 = arith.select %22, %34, %35 : vector<128x128xi1>, vector<128x128xf32>
    %cst_19 = arith.constant dense<0xFF800000> : vector<128xf32>
    %37 = vector.multi_reduction <maximumf>, %36, %cst_19 [1] : vector<128x128xf32> to vector<128xf32>
    %38 = vector.shape_cast %37 : vector<128xf32> to vector<128x1xf32>
    %39 = vector.broadcast %38 : vector<128x1xf32> to vector<128x128xf32>
    %40 = arith.cmpf oeq, %36, %39 : vector<128x128xf32>
    %c128_i32 = arith.constant 128 : i32
    %41 = vector.broadcast %c128_i32 : i32 to vector<128x128xi32>
    %42 = arith.select %40, %20, %41 : vector<128x128xi1>, vector<128x128xi32>
    %cst_20 = arith.constant dense<2147483647> : vector<128xi32>
    %43 = vector.multi_reduction <minsi>, %42, %cst_20 [1] : vector<128x128xi32> to vector<128xi32>
    %44 = vector.shape_cast %43 : vector<128xi32> to vector<128x1xi32>
    %45 = vector.broadcast %44 : vector<128x1xi32> to vector<128x128xi32>
    %46 = arith.cmpi eq, %20, %45 : vector<128x128xi32>
    %cst_21 = arith.constant 0.000000e+00 : f32
    %47 = vector.broadcast %cst_21 : f32 to vector<128x128xf32>
    %48 = arith.select %46, %28, %47 : vector<128x128xi1>, vector<128x128xf32>
    %cst_22 = arith.constant dense<0.000000e+00> : vector<128xf32>
    %49 = vector.multi_reduction <add>, %48, %cst_22 [1] : vector<128x128xf32> to vector<128xf32>
    %50 = vector.shape_cast %49 : vector<128xf32> to vector<128x1xf32>
    %51 = arith.subf %50, %32 : vector<128x1xf32>
    %c8_i32_23 = arith.constant 8 : i32
    %52 = vector.broadcast %c8_i32_23 : i32 to vector<128x128xi32>
    %53 = arith.cmpi eq, %20, %52 : vector<128x128xi32>
    %cst_24 = arith.constant 0.000000e+00 : f32
    %54 = vector.broadcast %cst_24 : f32 to vector<128x128xf32>
    %55 = arith.select %53, %19, %54 : vector<128x128xi1>, vector<128x128xf32>
    %cst_25 = arith.constant dense<0.000000e+00> : vector<128xf32>
    %56 = vector.multi_reduction <add>, %55, %cst_25 [1] : vector<128x128xf32> to vector<128xf32>
    %57 = vector.shape_cast %56 : vector<128xf32> to vector<128x1xf32>
    %58 = arith.sitofp %44 : vector<128x1xi32> to vector<128x1xf32>
    %c0_i32 = arith.constant 0 : i32
    %59 = vector.broadcast %c0_i32 : i32 to vector<128x128xi32>
    %60 = arith.cmpi eq, %20, %59 : vector<128x128xi32>
    %c1_i32 = arith.constant 1 : i32
    %61 = vector.broadcast %c1_i32 : i32 to vector<128x128xi32>
    %62 = arith.cmpi eq, %20, %61 : vector<128x128xi32>
    %c2_i32 = arith.constant 2 : i32
    %63 = vector.broadcast %c2_i32 : i32 to vector<128x128xi32>
    %64 = arith.cmpi eq, %20, %63 : vector<128x128xi32>
    %cst_26 = arith.constant 0.000000e+00 : f32
    %65 = vector.shape_cast %51 : vector<128x1xf32> to vector<128x1xf32>
    %66 = vector.broadcast %65 : vector<128x1xf32> to vector<128x128xf32>
    %67 = vector.broadcast %cst_26 : f32 to vector<128x128xf32>
    %68 = arith.select %64, %66, %67 : vector<128x128xi1>, vector<128x128xf32>
    %69 = vector.shape_cast %57 : vector<128x1xf32> to vector<128x1xf32>
    %70 = vector.broadcast %69 : vector<128x1xf32> to vector<128x128xf32>
    %71 = arith.select %62, %70, %68 : vector<128x128xi1>, vector<128x128xf32>
    %72 = vector.shape_cast %58 : vector<128x1xf32> to vector<128x1xf32>
    %73 = vector.broadcast %72 : vector<128x1xf32> to vector<128x128xf32>
    %74 = arith.select %60, %73, %71 : vector<128x128xi1>, vector<128x128xf32>
    %c0_27 = arith.constant 0 : index
    %c0_28 = arith.constant 0 : index
    %75 = vector.load %arg7[%c0_27, %c0_28] : memref<128x128xf32, #tpu.memory_space<vmem>>, vector<128x128xf32>
    tpu.vector_store %arg7[%c0_27, %c0_28], %74 {strides = array<i32>} : memref<128x128xf32, #tpu.memory_space<vmem>>, vector<128x128xf32>,
    return
  }
  func.func @transform_0(%arg0: i32) -> (i32, i32) {
    %c0_i32 = arith.constant 0 : i32
    %c0_i32_0 = arith.constant 0 : i32
    return %arg0, %c0_i32 : i32, i32
  }
  func.func @transform_1(%arg0: i32) -> (i32, i32) {
    %c0_i32 = arith.constant 0 : i32
    %c0_i32_0 = arith.constant 0 : i32
    return %arg0, %c0_i32 : i32, i32
  }
  func.func @transform_2(%arg0: i32) -> (i32, i32) {
    %c0_i32 = arith.constant 0 : i32
    %c0_i32_0 = arith.constant 0 : i32
    %c0_i32_1 = arith.constant 0 : i32
    return %c0_i32, %c0_i32_0 : i32, i32
  }
  func.func @transform_3(%arg0: i32) -> (i32, i32) {
    %c0_i32 = arith.constant 0 : i32
    %c0_i32_0 = arith.constant 0 : i32
    %c0_i32_1 = arith.constant 0 : i32
    return %c0_i32, %c0_i32_0 : i32, i32
  }
  func.func @transform_4(%arg0: i32) -> (i32, i32) {
    %c0_i32 = arith.constant 0 : i32
    %c0_i32_0 = arith.constant 0 : i32
    %c0_i32_1 = arith.constant 0 : i32
    return %c0_i32, %c0_i32_0 : i32, i32
  }
  func.func @transform_5(%arg0: i32) -> (i32, i32) {
    %c0_i32 = arith.constant 0 : i32
    %c0_i32_0 = arith.constant 0 : i32
    %c0_i32_1 = arith.constant 0 : i32
    return %c0_i32, %c0_i32_0 : i32, i32
  }
  func.func @transform_6(%arg0: i32) -> (i32, i32) {
    %c0_i32 = arith.constant 0 : i32
    %c0_i32_0 = arith.constant 0 : i32
    return %arg0, %c0_i32 : i32, i32
  }
}

</mosaic_0001>

<llo_original>
// kernel: tpu_custom_call.1
$region0: #{tpu_custom_call.1}
  #allocation0 [shape = 'u32[]', space=smem, size = 0x4, offset = 0x4, fixed_abs, tag = 'smem constant byte address 0x4 - core index']
  #allocation1 [shape = 'u32[72,128]{1,0:T(1,128)}', space=vmem, size = 0x9000, scoped, tag = 'internal scratch']
  %s0 = inlined_call_operand.vmem [shape: bf16[256,16], index: 0, kind: input, shape index: {}]
  %s1 = inlined_call_operand.hbm [shape: f32[256,128], index: 1, kind: input, shape index: {}]
  %s2 = inlined_call_operand.vmem [shape: bf16[16,256], index: 2, kind: input, shape index: {}]
  %s3 = inlined_call_operand.hbm [shape: bf16[256,256], index: 3, kind: input, shape index: {}]
  %s4 = inlined_call_operand.vmem [shape: bf16[256,128], index: 4, kind: input, shape index: {}]
  %s5 = inlined_call_operand.hbm [shape: f32[1,640], index: 5, kind: input, shape index: {}]
  %s6 = inlined_call_operand.hbm [shape: f32[256,128], index: 6, kind: output, shape index: {}]
  %s7 = sld [smem:[#allocation0]]
  $region69: #{tpu_custom_call.1} parent=0
    _
  %s9 = ssub.s32 1, %s7
  %s10 = scalar_select 0, %s9, %s7
  $region1: #{tpu_custom_call.1} parent=0
    #allocation2 [shape = 'u8[131072]{0}', space=vmem, size = 0x20000, scoped, tag = 'input window, operand 1']
    #allocation3 [shape = 's32[2]{0}', space=sflag, size = 0x8, scoped, tag = 'scoped memory for tpu_custom_call.1']
    #allocation4 [shape = 's32[2]{0}', space=sflag, size = 0x8, scoped, tag = 'scoped memory for tpu_custom_call.1']
    #allocation5 [shape = 'u8[131072]{0}', space=vmem, size = 0x20000, scoped, tag = 'input window, operand 3, single buffered']
    #allocation6 [shape = 's32[1]{0}', space=sflag, size = 0x4, scoped, tag = 'scoped memory for tpu_custom_call.1']
    #allocation7 [shape = 'u8[2560]{0}', space=vmem, size = 0xc00, scoped, tag = 'input window, operand 5, single buffered']
    #allocation8 [shape = 'u8[131072]{0}', space=vmem, size = 0x20000, scoped, tag = 'output window, operand 0']
    %11 = vsyncpa [#allocation3], 0
    %s12 = scalar_lea.sflag [#allocation3], 1
    %13 = vsyncpa %s12, 0
    %14 = vsyncpa [#allocation6], 0
    %15 = vsyncpa [#allocation4], 0
    %s16 = scalar_lea.sflag [#allocation4], 1
    %17 = vsyncpa %s16, 0
    loop: start=0, step=1, limit=4
    $region2: #{tpu_custom_call.1} parent=1 // loop_pre_header
      _
    $region3: #{tpu_custom_call.1} parent=1 // loop_header
      %s19 = sphi 0, %s23
      %p20 = scmp.ge.s32.totalorder %s19, 4
      %s29 = sphi 0, %s31
      %s32 = sphi 0, %s29
      %s33 = sphi 0, %s32
      %s49 = sphi 0, %s33
      %s55 = sphi 0, %s57
      %s58 = sphi 0, %s55
      %s59 = sphi 0, %s58
      %s75 = sphi 0, %s59
      %s79 = sphi 0, %s79
      %s81 = sphi 0, %s79
      %s82 = sphi 0, %s81
      %s96 = sphi 0, %s82
      %s100 = sphi 0, %s100
      %s102 = sphi 0, %s100
      %s103 = sphi 0, %s102
      %s117 = sphi 0, %s103
      %s121 = sphi 0, %s121
      %s123 = sphi 0, %s121
      %s124 = sphi 0, %s123
      %s138 = sphi 0, %s124
      %s142 = sphi 0, %s142
      %s144 = sphi 0, %s142
      %s145 = sphi 0, %s144
      %s159 = sphi 0, %s145
      %s165 = sphi 0, %s167
      %s168 = sphi 0, %s165
      %s169 = sphi 0, %s168
      %s185 = sphi 0, %s169
    $region4: #{tpu_custom_call.1} parent=1 // loop_header_branch
      %22 = sbr.rel (%p20) target = $region8
    $region5: #{tpu_custom_call.1} parent=1 // loop_body
      %s24 = ssub.s32 %s19, 1
      %s25 = ssub.s32 %s19, 2
      %s26 = sadd.s32 %s19, 1
      %s27 = ssub.s32 %s19, %s26
      %p28 = scmp.eq.s32.totalorder %s27, 0
      %s30 = sadd.s32 %s29, 1
      %s31 = scalar_select %p28, %s29, %s30
      %p34 = pneg %p28
      %p35 = scmp.eq.s32.totalorder %s19, 1
      %p36 = por %p34, %p35
      %p37 = scmp.ne.s32.totalorder %s29, %s32
      %p38 = scmp.eq.s32.totalorder %s19, 0
      %p39 = por %p37, %p38
      %p40 = scmp.ne.s32.totalorder %s29, %s32
      %p41 = scmp.eq.s32.totalorder %s24, 1
      %p42 = por %p40, %p41
      %p43 = scmp.ne.s32.totalorder %s32, %s33
      %p44 = scmp.eq.s32.totalorder %s24, 0
      %p45 = por %p43, %p44
      %p46 = scmp.ne.s32.totalorder %s32, %s33
      %p47 = scmp.eq.s32.totalorder %s25, 1
      %p48 = por %p46, %p47
      %p50 = scmp.ne.s32.totalorder %s33, %s49
      %p51 = scmp.eq.s32.totalorder %s25, 0
      %p52 = por %p50, %p51
      %s53 = ssub.s32 %s19, %s26
      %p54 = scmp.eq.s32.totalorder %s53, 0
      %s56 = sadd.s32 %s55, 1
      %s57 = scalar_select %p54, %s55, %s56
      %p60 = pneg %p54
      %p61 = scmp.eq.s32.totalorder %s19, 1
      %p62 = por %p60, %p61
      %p63 = scmp.ne.s32.totalorder %s55, %s58
      %p64 = scmp.eq.s32.totalorder %s19, 0
      %p65 = por %p63, %p64
      %p66 = scmp.ne.s32.totalorder %s55, %s58
      %p67 = scmp.eq.s32.totalorder %s24, 1
      %p68 = por %p66, %p67
      %p69 = scmp.ne.s32.totalorder %s58, %s59
      %p70 = scmp.eq.s32.totalorder %s24, 0
      %p71 = por %p69, %p70
      %p72 = scmp.ne.s32.totalorder %s58, %s59
      %p73 = scmp.eq.s32.totalorder %s25, 1
      %p74 = por %p72, %p73
      %p76 = scmp.ne.s32.totalorder %s59, %s75
      %p77 = scmp.eq.s32.totalorder %s25, 0
      %p78 = por %p76, %p77
      %s80 = sadd.s32 %s79, 1
      %p83 = scmp.eq.s32.totalorder %s19, 1
      %p84 = scmp.ne.s32.totalorder %s79, %s81
      %p85 = scmp.eq.s32.totalorder %s19, 0
      %p86 = por %p84, %p85
      %p87 = scmp.ne.s32.totalorder %s79, %s81
      %p88 = scmp.eq.s32.totalorder %s24, 1
      %p89 = por %p87, %p88
      %p90 = scmp.ne.s32.totalorder %s81, %s82
      %p91 = scmp.eq.s32.totalorder %s24, 0
      %p92 = por %p90, %p91
      %p93 = scmp.ne.s32.totalorder %s81, %s82
      %p94 = scmp.eq.s32.totalorder %s25, 1
      %p95 = por %p93, %p94
      %p97 = scmp.ne.s32.totalorder %s82, %s96
      %p98 = scmp.eq.s32.totalorder %s25, 0
      %p99 = por %p97, %p98
      %s101 = sadd.s32 %s100, 1
      %p104 = scmp.eq.s32.totalorder %s19, 1
      %p105 = scmp.ne.s32.totalorder %s100, %s102
      %p106 = scmp.eq.s32.totalorder %s19, 0
      %p107 = por %p105, %p106
      %p108 = scmp.ne.s32.totalorder %s100, %s102
      %p109 = scmp.eq.s32.totalorder %s24, 1
      %p110 = por %p108, %p109
      %p111 = scmp.ne.s32.totalorder %s102, %s103
      %p112 = scmp.eq.s32.totalorder %s24, 0
      %p113 = por %p111, %p112
      %p114 = scmp.ne.s32.totalorder %s102, %s103
      %p115 = scmp.eq.s32.totalorder %s25, 1
      %p116 = por %p114, %p115
      %p118 = scmp.ne.s32.totalorder %s103, %s117
      %p119 = scmp.eq.s32.totalorder %s25, 0
      %p120 = por %p118, %p119
      %s122 = sadd.s32 %s121, 1
      %p125 = scmp.eq.s32.totalorder %s19, 1
      %p126 = scmp.ne.s32.totalorder %s121, %s123
      %p127 = scmp.eq.s32.totalorder %s19, 0
      %p128 = por %p126, %p127
      %p129 = scmp.ne.s32.totalorder %s121, %s123
      %p130 = scmp.eq.s32.totalorder %s24, 1
      %p131 = por %p129, %p130
      %p132 = scmp.ne.s32.totalorder %s123, %s124
      %p133 = scmp.eq.s32.totalorder %s24, 0
      %p134 = por %p132, %p133
      %p135 = scmp.ne.s32.totalorder %s123, %s124
      %p136 = scmp.eq.s32.totalorder %s25, 1
      %p137 = por %p135, %p136
      %p139 = scmp.ne.s32.totalorder %s124, %s138
      %p140 = scmp.eq.s32.totalorder %s25, 0
      %p141 = por %p139, %p140
      %s143 = sadd.s32 %s142, 1
      %p146 = scmp.eq.s32.totalorder %s19, 1
      %p147 = scmp.ne.s32.totalorder %s142, %s144
      %p148 = scmp.eq.s32.totalorder %s19, 0
      %p149 = por %p147, %p148
      %p150 = scmp.ne.s32.totalorder %s142, %s144
      %p151 = scmp.eq.s32.totalorder %s24, 1
      %p152 = por %p150, %p151
      %p153 = scmp.ne.s32.totalorder %s144, %s145
      %p154 = scmp.eq.s32.totalorder %s24, 0
      %p155 = por %p153, %p154
      %p156 = scmp.ne.s32.totalorder %s144, %s145
      %p157 = scmp.eq.s32.totalorder %s25, 1
      %p158 = por %p156, %p157
      %p160 = scmp.ne.s32.totalorder %s145, %s159
      %p161 = scmp.eq.s32.totalorder %s25, 0
      %p162 = por %p160, %p161
      %s163 = ssub.s32 %s19, %s26
      %p164 = scmp.eq.s32.totalorder %s163, 0
      %s166 = sadd.s32 %s165, 1
      %s167 = scalar_select %p164, %s165, %s166
      %p170 = pneg %p164
      %p171 = scmp.eq.s32.totalorder %s19, 1
      %p172 = por %p170, %p171
      %p173 = scmp.ne.s32.totalorder %s165, %s168
      %p174 = scmp.eq.s32.totalorder %s19, 0
      %p175 = por %p173, %p174
      %p176 = scmp.ne.s32.totalorder %s165, %s168
      %p177 = scmp.eq.s32.totalorder %s24, 1
      %p178 = por %p176, %p177
      %p179 = scmp.ne.s32.totalorder %s168, %s169
      %p180 = scmp.eq.s32.totalorder %s24, 0
      %p181 = por %p179, %p180
      %p182 = scmp.ne.s32.totalorder %s168, %s169
      %p183 = scmp.eq.s32.totalorder %s25, 1
      %p184 = por %p182, %p183
      %p186 = scmp.ne.s32.totalorder %s169, %s185
      %p187 = scmp.eq.s32.totalorder %s25, 0
      %p188 = por %p186, %p187
      %p189 = scmp.le.s32.totalorder 1, %s19
      %p190 = scmp.lt.s32.totalorder %s19, 3
      %p191 = pnand %p189, %p190
      %p192 = pneg %p191
      // Predicated region
      $region9: #{tpu_custom_call.1} parent=5 // pred_check
        _
      $region10: #{tpu_custom_call.1} parent=5 // pred_check_branch
        %194 = sbr.rel (%p191) target = $region12
      $region11: #{tpu_custom_call.1} parent=5 // pred_region
        %s195 = ssub.s32 %s19, 1
        // Predicated region
        $region13: #{tpu_custom_call.1} parent=11 // pred_check
          %p196 = pneg %p92
        $region14: #{tpu_custom_call.1} parent=11 // pred_check_branch
          %198 = sbr.rel (%p196) target = $region16
        $region15: #{tpu_custom_call.1} parent=11 // pred_region
          _
        $region16: #{tpu_custom_call.1} parent=11 // pred_fallthru
          _
        // Predicated region
        $region17: #{tpu_custom_call.1} parent=11 // pred_check
          %p199 = pneg %p113
        $region18: #{tpu_custom_call.1} parent=11 // pred_check_branch
          %201 = sbr.rel (%p199) target = $region20
        $region19: #{tpu_custom_call.1} parent=11 // pred_region
          %203 = vsyncadd [#allocation6], 0
          %s204 = sshll.u32 %s3, 4
          %s205 = int_to_ptr.hbm [resolvable:$true] %s204
          %s206 = sshll.u32 [#allocation5], 4
          %s207 = int_to_ptr.vmem [resolvable:$true] %s206
          %212 = dma.hbm_to_vmem [thread:$0]  %s205, 4096, %s207, [#allocation6], 128, 128, 8
        $region20: #{tpu_custom_call.1} parent=11 // pred_fallthru
          _
        // Predicated region
        $region21: #{tpu_custom_call.1} parent=11 // pred_check
          %p213 = pneg %p134
        $region22: #{tpu_custom_call.1} parent=11 // pred_check_branch
          %215 = sbr.rel (%p213) target = $region24
        $region23: #{tpu_custom_call.1} parent=11 // pred_region
          _
        $region24: #{tpu_custom_call.1} parent=11 // pred_fallthru
          _
        // Predicated region
        $region25: #{tpu_custom_call.1} parent=11 // pred_check
          %p216 = pneg %p155
        $region26: #{tpu_custom_call.1} parent=11 // pred_check_branch
          %218 = sbr.rel (%p216) target = $region28
        $region27: #{tpu_custom_call.1} parent=11 // pred_region
          %220 = vsyncadd [#allocation6], 0
          %s222 = sshll.u32 %s5, 4
          %s223 = int_to_ptr.hbm [resolvable:$true] %s222
          %s224 = sshll.u32 [#allocation7], 4
          %s225 = int_to_ptr.vmem [resolvable:$true] %s224
          %227 = dma.hbm_to_vmem [thread:$0]  %s223, 80, %s225, [#allocation6]
        $region28: #{tpu_custom_call.1} parent=11 // pred_fallthru
          _
      $region12: #{tpu_custom_call.1} parent=5 // pred_fallthru
        _
      %p228 = scmp.lt.s32.totalorder %s19, 2
      // Predicated region
      $region29: #{tpu_custom_call.1} parent=5 // pred_check
        %p229 = pneg %p228
      $region30: #{tpu_custom_call.1} parent=5 // pred_check_branch
        %231 = sbr.rel (%p229) target = $region32
      $region31: #{tpu_custom_call.1} parent=5 // pred_region
        // Predicated region
        $region33: #{tpu_custom_call.1} parent=31 // pred_check
          %p232 = pneg %p39
        $region34: #{tpu_custom_call.1} parent=31 // pred_check_branch
          %234 = sbr.rel (%p232) target = $region36
        $region35: #{tpu_custom_call.1} parent=31 // pred_region
          %s235 = smul.u32 16, %s19
          %p236 = scmp.lt.s32.totalorder %s235, 31
          %s237 = scalar_select %p236, %s235, 31
          %s238 = smul.addr %s237, 4
          %s239 = scalar_lea.vmem %s0, %s238
          %s240 = smul.u32 16, %s19
        $region36: #{tpu_custom_call.1} parent=31 // pred_fallthru
          _
        // Predicated region
        $region37: #{tpu_custom_call.1} parent=31 // pred_check
          %p241 = pneg %p65
        $region38: #{tpu_custom_call.1} parent=31 // pred_check_branch
          %243 = sbr.rel (%p241) target = $region40
        $region39: #{tpu_custom_call.1} parent=31 // pred_region
          %s244 = sand.u32 %s55, 1
          %s245 = scalar_lea.sflag [#allocation3], %s244
          %s246 = sand.u32 %s55, 1
          %s247 = smul.addr %s246, 128
          %s248 = scalar_lea.vmem [#allocation2], %s247
          %s249 = smul.u32 16, %s19
          %251 = vsyncadd %s245, 0
          %s252 = smul.addr %s249, 8
          %s253 = scalar_lea.hbm %s1, %s252
          %s254 = sshll.u32 %s253, 4
          %s255 = int_to_ptr.hbm [resolvable:$true] %s254
          %s256 = sshll.u32 %s248, 4
          %s257 = int_to_ptr.vmem [resolvable:$true] %s256
          %262 = dma.hbm_to_vmem [thread:$0]  %s255, 2048, %s257, %s245, 128, 128, 8
        $region40: #{tpu_custom_call.1} parent=31 // pred_fallthru
          _
      $region32: #{tpu_custom_call.1} parent=5 // pred_fallthru
        _
      %p263 = scmp.le.s32.totalorder 1, %s19
      %p264 = scmp.lt.s32.totalorder %s19, 3
      %p265 = pnand %p263, %p264
      %p266 = pneg %p265
      // Predicated region
      $region41: #{tpu_custom_call.1} parent=5 // pred_check
        _
      $region42: #{tpu_custom_call.1} parent=5 // pred_check_branch
        %268 = sbr.rel (%p265) target = $region44
      $region43: #{tpu_custom_call.1} parent=5 // pred_region
        %s269 = ssub.s32 %s19, 1
        %s270 = sand.u32 %s58, 1
        %s271 = scalar_lea.sflag [#allocation3], %s270
        %s272 = sand.u32 %s58, 1
        %s273 = smul.addr %s272, 128
        %s274 = scalar_lea.vmem [#allocation2], %s273
        // Predicated region
        $region45: #{tpu_custom_call.1} parent=43 // pred_check
          %p275 = pneg %p71
        $region46: #{tpu_custom_call.1} parent=43 // pred_check_branch
          %277 = sbr.rel (%p275) target = $region48
        $region47: #{tpu_custom_call.1} parent=43 // pred_region
          %279 = dma.done %s271, 2048
        $region48: #{tpu_custom_call.1} parent=43 // pred_fallthru
          _
        // Predicated region
        $region49: #{tpu_custom_call.1} parent=43 // pred_check
          %p280 = pneg %p113
        $region50: #{tpu_custom_call.1} parent=43 // pred_check_branch
          %282 = sbr.rel (%p280) target = $region52
        $region51: #{tpu_custom_call.1} parent=43 // pred_region
          %284 = dma.done [#allocation6], 4096
        $region52: #{tpu_custom_call.1} parent=43 // pred_fallthru
          _
        // Predicated region
        $region53: #{tpu_custom_call.1} parent=43 // pred_check
          %p285 = pneg %p155
        $region54: #{tpu_custom_call.1} parent=43 // pred_check_branch
          %287 = sbr.rel (%p285) target = $region56
        $region55: #{tpu_custom_call.1} parent=43 // pred_region
          %289 = dma.done [#allocation6], 80
        $region56: #{tpu_custom_call.1} parent=43 // pred_fallthru
          _
        %s290 = smul.u32 16, %s24
        %p291 = scmp.lt.s32.totalorder %s290, 31
        %s292 = scalar_select %p291, %s290, 31
        %s293 = smul.addr %s292, 4
        %s294 = scalar_lea.vmem %s0, %s293
        %p295 = pneg %p45
        %p296 = pneg %p42
        %s297 = sand.u32 %s58, 1
        %s298 = scalar_lea.sflag [#allocation3], %s297
        %s299 = sand.u32 %s58, 1
        %s300 = smul.addr %s299, 128
        %s301 = scalar_lea.vmem [#allocation2], %s300
        %p302 = pneg %p71
        %p303 = pneg %p68
        %p304 = pneg %p92
        %p305 = pneg %p89
        %p306 = pneg %p113
        %p307 = pneg %p110
        %p308 = pneg %p134
        %p309 = pneg %p131
        %p310 = pneg %p155
        %p311 = pneg %p152
        %p312 = pneg %p181
        %p313 = pneg %p178
        %s314 = sand.u32 %s168, 1
        %s315 = scalar_lea.sflag [#allocation4], %s314
        %s316 = sand.u32 %s168, 1
        %s317 = smul.addr %s316, 128
        %s318 = scalar_lea.vmem [#allocation8], %s317
        %s319 = smul.u32 16, %s24
        %p320 = scmp.lt.s32.totalorder %s319, 31
        %s321 = scalar_select %p320, %s319, 31
        %s322 = smul.addr %s321, 4
        %s323 = scalar_lea.vmem %s0, %s322
        %s324 = smul.u32 16, %s24
        %s325 = smul.u32 16, %s24
        %s326 = smul.u32 16, %s24
        %v328 = vld [vmem:[#allocation7] sm:$0x3]
        %v329 = vld [vmem:[#allocation7 + $0x2] sm:$0x3]
        %v330 = vld [vmem:[#allocation7 + $0x4] sm:$0x1]
        %v331 = vld [vmem:[%s323] sm:$0xf]
        %v332 = vld [vmem:[%s323 + $0x4] sm:$0xf]
        %v333 = vld [vmem:[%s323 + $0x8] sm:$0xf]
        %v334 = vld [vmem:[%s323 + $0xc] sm:$0xf]
        %v335 = vld [vmem:[%s323 + $0x10] sm:$0xf]
        %v336 = vld [vmem:[%s323 + $0x14] sm:$0xf]
        %v337 = vld [vmem:[%s323 + $0x18] sm:$0xf]
        %v338 = vld [vmem:[%s323 + $0x1c] sm:$0xf]
        %v339 = vld [vmem:[%s323 + $0x20] sm:$0xf]
        %v340 = vld [vmem:[%s323 + $0x24] sm:$0xf]
        %v341 = vld [vmem:[%s323 + $0x28] sm:$0xf]
        %v342 = vld [vmem:[%s323 + $0x2c] sm:$0xf]
        %v343 = vld [vmem:[%s323 + $0x30] sm:$0xf]
        %v344 = vld [vmem:[%s323 + $0x34] sm:$0xf]
        %v345 = vld [vmem:[%s323 + $0x38] sm:$0xf]
        %v346 = vld [vmem:[%s323 + $0x3c] sm:$0xf]
        %v347 = vld [vmem:[%s2] sm:$0xff]
        %v348 = vld [vmem:[%s2 + $0x8] sm:$0xff]
        %v350 = vperm.slane %v328, 0
        %v351 = vperm.slane %v328, 1
        %v370 = vunpack.c.l.b16 %v331
        %v371 = vunpack.c.l.b16 %v332
        %v372 = vunpack.c.l.b16 %v333
        %v373 = vunpack.c.l.b16 %v334
        %v374 = vunpack.c.l.b16 %v335
        %v375 = vunpack.c.l.b16 %v336
        %v376 = vunpack.c.l.b16 %v337
        %v377 = vunpack.c.l.b16 %v338
        %v378 = vunpack.c.l.b16 %v339
        %v379 = vunpack.c.l.b16 %v340
        %v380 = vunpack.c.l.b16 %v341
        %v381 = vunpack.c.l.b16 %v342
        %v382 = vunpack.c.l.b16 %v343
        %v383 = vunpack.c.l.b16 %v344
        %v384 = vunpack.c.l.b16 %v345
        %v385 = vunpack.c.l.b16 %v346
        %v386 = vpack.c.b16 %v371, %v370
        %v387 = vpack.c.b16 %v373, %v372
        %v388 = vpack.c.b16 %v375, %v374
        %v389 = vpack.c.b16 %v377, %v376
        %v390 = vpack.c.b16 %v379, %v378
        %v391 = vpack.c.b16 %v381, %v380
        %v392 = vpack.c.b16 %v383, %v382
        %v393 = vpack.c.b16 %v385, %v384
        %v396 = vunpack.c.l.b16 %v347
        %v397 = vunpack.c.h.b16 %v347
        %v398 = vunpack.c.l.b16 %v348
        %v399 = vunpack.c.h.b16 %v348
        %v400 = vpack.c.b16 %v398, %v396
        %v401 = vpack.c.b16 %v399, %v397
        %vm404 = vcmask 130048
        %v406 = vsel %vm404, %v386, 0
        %v409 = vsel %vm404, %v387, 0
        %v412 = vsel %vm404, %v388, 0
        %v415 = vsel %vm404, %v389, 0
        %v418 = vsel %vm404, %v390, 0
        %v421 = vsel %vm404, %v391, 0
        %v424 = vsel %vm404, %v392, 0
        %v427 = vsel %vm404, %v393, 0
        %429 = vmatpush.bf16.msra.mxu0 0
        %430 = vmatpush.bf16.msra.mxu0 0
        %431 = vmatpush.bf16.msra.mxu0 0
        %432 = vmatpush.bf16.msra.mxu0 0
        %433 = vmatpush.bf16.msra.mxu0 0
        %434 = vmatpush.bf16.msra.mxu0 0
        %435 = vmatpush.bf16.msra.mxu0 0
        %436 = vmatpush.bf16.msra.mxu0 %v400
        %437 = vmatmul.bf16.gmra.mxu0 %v406
        %v438 = vpop.f32.mrf.mxu0
        %v439 = vadd.f32 %v350, %v438
        %v440 = vpop.f32.mrf.mxu0
        %v441 = vadd.f32 %v350, %v440
        %442 = vmatmul.bf16.gmra.mxu0 %v409
        %v443 = vpop.f32.mrf.mxu0
        %v444 = vadd.f32 %v350, %v443
        %v445 = vpop.f32.mrf.mxu0
        %v446 = vadd.f32 %v350, %v445
        %447 = vmatmul.bf16.gmra.mxu0 %v412
        %v448 = vpop.f32.mrf.mxu0
        %v449 = vadd.f32 %v350, %v448
        %v450 = vpop.f32.mrf.mxu0
        %v451 = vadd.f32 %v350, %v450
        %452 = vmatmul.bf16.gmra.mxu0 %v415
        %v453 = vpop.f32.mrf.mxu0
        %v454 = vadd.f32 %v350, %v453
        %v455 = vpop.f32.mrf.mxu0
        %v456 = vadd.f32 %v350, %v455
        %457 = vmatmul.bf16.gmra.mxu0 %v418
        %v458 = vpop.f32.mrf.mxu0
        %v459 = vadd.f32 %v350, %v458
        %v460 = vpop.f32.mrf.mxu0
        %v461 = vadd.f32 %v350, %v460
        %462 = vmatmul.bf16.gmra.mxu0 %v421
        %v463 = vpop.f32.mrf.mxu0
        %v464 = vadd.f32 %v350, %v463
        %v465 = vpop.f32.mrf.mxu0
        %v466 = vadd.f32 %v350, %v465
        %467 = vmatmul.bf16.gmra.mxu0 %v424
        %v468 = vpop.f32.mrf.mxu0
        %v469 = vadd.f32 %v350, %v468
        %v470 = vpop.f32.mrf.mxu0
        %v471 = vadd.f32 %v350, %v470
        %472 = vmatmul.bf16.gmra.mxu0 %v427
        %v473 = vpop.f32.mrf.mxu0
        %v474 = vadd.f32 %v350, %v473
        %v475 = vpop.f32.mrf.mxu0
        %v476 = vadd.f32 %v350, %v475
        %477 = vdwg.mxu0
        %478 = vmatpush.bf16.msra.mxu0 0
        %479 = vmatpush.bf16.msra.mxu0 0
        %480 = vmatpush.bf16.msra.mxu0 0
        %481 = vmatpush.bf16.msra.mxu0 0
        %482 = vmatpush.bf16.msra.mxu0 0
        %483 = vmatpush.bf16.msra.mxu0 0
        %484 = vmatpush.bf16.msra.mxu0 0
        %485 = vmatpush.bf16.msra.mxu0 %v401
        %486 = vmatmul.bf16.gmra.mxu0 %v406
        %v487 = vpop.f32.mrf.mxu0
        %v488 = vadd.f32 %v351, %v487
        %v489 = vpop.f32.mrf.mxu0
        %v490 = vadd.f32 %v351, %v489
        %491 = vmatmul.bf16.gmra.mxu0 %v409
        %v492 = vpop.f32.mrf.mxu0
        %v493 = vadd.f32 %v351, %v492
        %v494 = vpop.f32.mrf.mxu0
        %v495 = vadd.f32 %v351, %v494
        %496 = vmatmul.bf16.gmra.mxu0 %v412
        %v497 = vpop.f32.mrf.mxu0
        %v498 = vadd.f32 %v351, %v497
        %v499 = vpop.f32.mrf.mxu0
        %v500 = vadd.f32 %v351, %v499
        %501 = vmatmul.bf16.gmra.mxu0 %v415
        %v502 = vpop.f32.mrf.mxu0
        %v503 = vadd.f32 %v351, %v502
        %v504 = vpop.f32.mrf.mxu0
        %v505 = vadd.f32 %v351, %v504
        %506 = vmatmul.bf16.gmra.mxu0 %v418
        %v507 = vpop.f32.mrf.mxu0
        %v508 = vadd.f32 %v351, %v507
        %v509 = vpop.f32.mrf.mxu0
        %v510 = vadd.f32 %v351, %v509
        %511 = vmatmul.bf16.gmra.mxu0 %v421
        %v512 = vpop.f32.mrf.mxu0
        %v513 = vadd.f32 %v351, %v512
        %v514 = vpop.f32.mrf.mxu0
        %v515 = vadd.f32 %v351, %v514
        %516 = vmatmul.bf16.gmra.mxu0 %v424
        %v517 = vpop.f32.mrf.mxu0
        %v518 = vadd.f32 %v351, %v517
        %v519 = vpop.f32.mrf.mxu0
        %v520 = vadd.f32 %v351, %v519
        %521 = vmatmul.bf16.gmra.mxu0 %v427
        %v522 = vpop.f32.mrf.mxu0
        %v523 = vadd.f32 %v351, %v522
        %v524 = vpop.f32.mrf.mxu0
        %v525 = vadd.f32 %v351, %v524
        %526 = vdwg.mxu0
        %v527 = vtanh.pop %v439
        %v528 = vtanh.pop %v488
        %v529 = vtanh.pop %v441
        %v530 = vtanh.pop %v490
        %v531 = vtanh.pop %v444
        %v532 = vtanh.pop %v493
        %v533 = vtanh.pop %v446
        %v534 = vtanh.pop %v495
        %v535 = vtanh.pop %v449
        %v536 = vtanh.pop %v498
        %v537 = vtanh.pop %v451
        %v538 = vtanh.pop %v500
        %v539 = vtanh.pop %v454
        %v540 = vtanh.pop %v503
        %v541 = vtanh.pop %v456
        %v542 = vtanh.pop %v505
        %v543 = vtanh.pop %v459
        %v544 = vtanh.pop %v508
        %v545 = vtanh.pop %v461
        %v546 = vtanh.pop %v510
        %v547 = vtanh.pop %v464
        %v548 = vtanh.pop %v513
        %v549 = vtanh.pop %v466
        %v550 = vtanh.pop %v515
        %v551 = vtanh.pop %v469
        %v552 = vtanh.pop %v518
        %v553 = vtanh.pop %v471
        %v554 = vtanh.pop %v520
        %v555 = vtanh.pop %v474
        %v556 = vtanh.pop %v523
        %v557 = vtanh.pop %v476
        %v558 = vtanh.pop %v525
        %v559 = vpack.c.bf16 %v529, %v527
        %v560 = vpack.c.bf16 %v530, %v528
        %v561 = vpack.c.bf16 %v533, %v531
        %v562 = vpack.c.bf16 %v534, %v532
        %v563 = vpack.c.bf16 %v537, %v535
        %v564 = vpack.c.bf16 %v538, %v536
        %v565 = vpack.c.bf16 %v541, %v539
        %v566 = vpack.c.bf16 %v542, %v540
        %v567 = vpack.c.bf16 %v545, %v543
        %v568 = vpack.c.bf16 %v546, %v544
        %v569 = vpack.c.bf16 %v549, %v547
        %v570 = vpack.c.bf16 %v550, %v548
        %v571 = vpack.c.bf16 %v553, %v551
        %v572 = vpack.c.bf16 %v554, %v552
        %v573 = vpack.c.bf16 %v557, %v555
        %v574 = vpack.c.bf16 %v558, %v556
        %v575 = vld [vmem:[#allocation5] sm:$0xff]
        %v576 = vld [vmem:[#allocation5 + $0x8] sm:$0xff]
        %v577 = vld [vmem:[#allocation5 + $0x10] sm:$0xff]
        %v578 = vld [vmem:[#allocation5 + $0x18] sm:$0xff]
        %v579 = vld [vmem:[#allocation5 + $0x20] sm:$0xff]
        %v580 = vld [vmem:[#allocation5 + $0x28] sm:$0xff]
        %v581 = vld [vmem:[#allocation5 + $0x30] sm:$0xff]
        %v582 = vld [vmem:[#allocation5 + $0x38] sm:$0xff]
        %v583 = vld [vmem:[#allocation5 + $0x40] sm:$0xff]
        %v584 = vld [vmem:[#allocation5 + $0x48] sm:$0xff]
        %v585 = vld [vmem:[#allocation5 + $0x50] sm:$0xff]
        %v586 = vld [vmem:[#allocation5 + $0x58] sm:$0xff]
        %v587 = vld [vmem:[#allocation5 + $0x60] sm:$0xff]
        %v588 = vld [vmem:[#allocation5 + $0x68] sm:$0xff]
        %v589 = vld [vmem:[#allocation5 + $0x70] sm:$0xff]
        %v590 = vld [vmem:[#allocation5 + $0x78] sm:$0xff]
        %v591 = vld [vmem:[#allocation5 + $0x80] sm:$0xff]
        %v592 = vld [vmem:[#allocation5 + $0x88] sm:$0xff]
        %v593 = vld [vmem:[#allocation5 + $0x90] sm:$0xff]
        %v594 = vld [vmem:[#allocation5 + $0x98] sm:$0xff]
        %v595 = vld [vmem:[#allocation5 + $0xa0] sm:$0xff]
        %v596 = vld [vmem:[#allocation5 + $0xa8] sm:$0xff]
        %v597 = vld [vmem:[#allocation5 + $0xb0] sm:$0xff]
        %v598 = vld [vmem:[#allocation5 + $0xb8] sm:$0xff]
        %v599 = vld [vmem:[#allocation5 + $0xc0] sm:$0xff]
        %v600 = vld [vmem:[#allocation5 + $0xc8] sm:$0xff]
        %v601 = vld [vmem:[#allocation5 + $0xd0] sm:$0xff]
        %v602 = vld [vmem:[#allocation5 + $0xd8] sm:$0xff]
        %v603 = vld [vmem:[#allocation5 + $0xe0] sm:$0xff]
        %v604 = vld [vmem:[#allocation5 + $0xe8] sm:$0xff]
        %v605 = vld [vmem:[#allocation5 + $0xf0] sm:$0xff]
        %v606 = vld [vmem:[#allocation5 + $0xf8] sm:$0xff]
        %v608 = vperm.slane %v329, 0
        %v609 = vperm.slane %v329, 1
        %v644 = vunpack.c.l.b16 %v575
        %v645 = vunpack.c.h.b16 %v575
        %v646 = vunpack.c.l.b16 %v576
        %v647 = vunpack.c.h.b16 %v576
        %v648 = vunpack.c.l.b16 %v577
        %v649 = vunpack.c.h.b16 %v577
        %v650 = vunpack.c.l.b16 %v578
        %v651 = vunpack.c.h.b16 %v578
        %v652 = vunpack.c.l.b16 %v579
        %v653 = vunpack.c.h.b16 %v579
        %v654 = vunpack.c.l.b16 %v580
        %v655 = vunpack.c.h.b16 %v580
        %v656 = vunpack.c.l.b16 %v581
        %v657 = vunpack.c.h.b16 %v581
        %v658 = vunpack.c.l.b16 %v582
        %v659 = vunpack.c.h.b16 %v582
        %v660 = vunpack.c.l.b16 %v583
        %v661 = vunpack.c.h.b16 %v583
        %v662 = vunpack.c.l.b16 %v584
        %v663 = vunpack.c.h.b16 %v584
        %v664 = vunpack.c.l.b16 %v585
        %v665 = vunpack.c.h.b16 %v585
        %v666 = vunpack.c.l.b16 %v586
        %v667 = vunpack.c.h.b16 %v586
        %v668 = vunpack.c.l.b16 %v587
        %v669 = vunpack.c.h.b16 %v587
        %v670 = vunpack.c.l.b16 %v588
        %v671 = vunpack.c.h.b16 %v588
        %v672 = vunpack.c.l.b16 %v589
        %v673 = vunpack.c.h.b16 %v589
        %v674 = vunpack.c.l.b16 %v590
        %v675 = vunpack.c.h.b16 %v590
        %v676 = vunpack.c.l.b16 %v591
        %v677 = vunpack.c.h.b16 %v591
        %v678 = vunpack.c.l.b16 %v592
        %v679 = vunpack.c.h.b16 %v592
        %v680 = vunpack.c.l.b16 %v593
        %v681 = vunpack.c.h.b16 %v593
        %v682 = vunpack.c.l.b16 %v594
        %v683 = vunpack.c.h.b16 %v594
        %v684 = vunpack.c.l.b16 %v595
        %v685 = vunpack.c.h.b16 %v595
        %v686 = vunpack.c.l.b16 %v596
        %v687 = vunpack.c.h.b16 %v596
        %v688 = vunpack.c.l.b16 %v597
        %v689 = vunpack.c.h.b16 %v597
        %v690 = vunpack.c.l.b16 %v598
        %v691 = vunpack.c.h.b16 %v598
        %v692 = vunpack.c.l.b16 %v599
        %v693 = vunpack.c.h.b16 %v599
        %v694 = vunpack.c.l.b16 %v600
        %v695 = vunpack.c.h.b16 %v600
        %v696 = vunpack.c.l.b16 %v601
        %v697 = vunpack.c.h.b16 %v601
        %v698 = vunpack.c.l.b16 %v602
        %v699 = vunpack.c.h.b16 %v602
        %v700 = vunpack.c.l.b16 %v603
        %v701 = vunpack.c.h.b16 %v603
        %v702 = vunpack.c.l.b16 %v604
        %v703 = vunpack.c.h.b16 %v604
        %v704 = vunpack.c.l.b16 %v605
        %v705 = vunpack.c.h.b16 %v605
        %v706 = vunpack.c.l.b16 %v606
        %v707 = vunpack.c.h.b16 %v606
        %v708 = vpack.c.b16 %v646, %v644
        %v709 = vpack.c.b16 %v647, %v645
        %v710 = vpack.c.b16 %v650, %v648
        %v711 = vpack.c.b16 %v651, %v649
        %v712 = vpack.c.b16 %v654, %v652
        %v713 = vpack.c.b16 %v655, %v653
        %v714 = vpack.c.b16 %v658, %v656
        %v715 = vpack.c.b16 %v659, %v657
        %v716 = vpack.c.b16 %v662, %v660
        %v717 = vpack.c.b16 %v663, %v661
        %v718 = vpack.c.b16 %v666, %v664
        %v719 = vpack.c.b16 %v667, %v665
        %v720 = vpack.c.b16 %v670, %v668
        %v721 = vpack.c.b16 %v671, %v669
        %v722 = vpack.c.b16 %v674, %v672
        %v723 = vpack.c.b16 %v675, %v673
        %v724 = vpack.c.b16 %v678, %v676
        %v725 = vpack.c.b16 %v679, %v677
        %v726 = vpack.c.b16 %v682, %v680
        %v727 = vpack.c.b16 %v683, %v681
        %v728 = vpack.c.b16 %v686, %v684
        %v729 = vpack.c.b16 %v687, %v685
        %v730 = vpack.c.b16 %v690, %v688
        %v731 = vpack.c.b16 %v691, %v689
        %v732 = vpack.c.b16 %v694, %v692
        %v733 = vpack.c.b16 %v695, %v693
        %v734 = vpack.c.b16 %v698, %v696
        %v735 = vpack.c.b16 %v699, %v697
        %v736 = vpack.c.b16 %v702, %v700
        %v737 = vpack.c.b16 %v703, %v701
        %v738 = vpack.c.b16 %v706, %v704
        %v739 = vpack.c.b16 %v707, %v705
        %772 = vmatpush.bf16.msra.mxu0 %v722
        %773 = vmatpush.bf16.msra.mxu0 %v720
        %774 = vmatpush.bf16.msra.mxu0 %v718
        %775 = vmatpush.bf16.msra.mxu0 %v716
        %776 = vmatpush.bf16.msra.mxu0 %v714
        %777 = vmatpush.bf16.msra.mxu0 %v712
        %778 = vmatpush.bf16.msra.mxu0 %v710
        %779 = vmatpush.bf16.msra.mxu0 %v708
        %780 = vmatmul.bf16.gmra.mxu0 %v559
        %v781 = vpop.f32.mrf.mxu0
        %v782 = vadd.f32 %v608, %v781
        %v783 = vpop.f32.mrf.mxu0
        %v784 = vadd.f32 %v608, %v783
        %785 = vmatmul.bf16.gmra.mxu0 %v561
        %v786 = vpop.f32.mrf.mxu0
        %v787 = vadd.f32 %v608, %v786
        %v788 = vpop.f32.mrf.mxu0
        %v789 = vadd.f32 %v608, %v788
        %790 = vmatmul.bf16.gmra.mxu0 %v563
        %v791 = vpop.f32.mrf.mxu0
        %v792 = vadd.f32 %v608, %v791
        %v793 = vpop.f32.mrf.mxu0
        %v794 = vadd.f32 %v608, %v793
        %795 = vmatmul.bf16.gmra.mxu0 %v565
        %v796 = vpop.f32.mrf.mxu0
        %v797 = vadd.f32 %v608, %v796
        %v798 = vpop.f32.mrf.mxu0
        %v799 = vadd.f32 %v608, %v798
        %800 = vmatmul.bf16.gmra.mxu0 %v567
        %v801 = vpop.f32.mrf.mxu0
        %v802 = vadd.f32 %v608, %v801
        %v803 = vpop.f32.mrf.mxu0
        %v804 = vadd.f32 %v608, %v803
        %805 = vmatmul.bf16.gmra.mxu0 %v569
        %v806 = vpop.f32.mrf.mxu0
        %v807 = vadd.f32 %v608, %v806
        %v808 = vpop.f32.mrf.mxu0
        %v809 = vadd.f32 %v608, %v808
        %810 = vmatmul.bf16.gmra.mxu0 %v571
        %v811 = vpop.f32.mrf.mxu0
        %v812 = vadd.f32 %v608, %v811
        %v813 = vpop.f32.mrf.mxu0
        %v814 = vadd.f32 %v608, %v813
        %815 = vmatmul.bf16.gmra.mxu0 %v573
        %v816 = vpop.f32.mrf.mxu0
        %v817 = vadd.f32 %v608, %v816
        %v818 = vpop.f32.mrf.mxu0
        %v819 = vadd.f32 %v608, %v818
        %820 = vdwg.mxu0
        %821 = vmatpush.bf16.msra.mxu0 %v738
        %822 = vmatpush.bf16.msra.mxu0 %v736
        %823 = vmatpush.bf16.msra.mxu0 %v734
        %824 = vmatpush.bf16.msra.mxu0 %v732
        %825 = vmatpush.bf16.msra.mxu0 %v730
        %826 = vmatpush.bf16.msra.mxu0 %v728
        %827 = vmatpush.bf16.msra.mxu0 %v726
        %828 = vmatpush.bf16.msra.mxu0 %v724
        %829 = vmatmul.bf16.gmra.mxu0 %v560
        %v830 = vpop.f32.mrf.mxu0
        %v831 = vadd.f32 %v782, %v830
        %v832 = vpop.f32.mrf.mxu0
        %v833 = vadd.f32 %v784, %v832
        %834 = vmatmul.bf16.gmra.mxu0 %v562
        %v835 = vpop.f32.mrf.mxu0
        %v836 = vadd.f32 %v787, %v835
        %v837 = vpop.f32.mrf.mxu0
        %v838 = vadd.f32 %v789, %v837
        %839 = vmatmul.bf16.gmra.mxu0 %v564
        %v840 = vpop.f32.mrf.mxu0
        %v841 = vadd.f32 %v792, %v840
        %v842 = vpop.f32.mrf.mxu0
        %v843 = vadd.f32 %v794, %v842
        %844 = vmatmul.bf16.gmra.mxu0 %v566
        %v845 = vpop.f32.mrf.mxu0
        %v846 = vadd.f32 %v797, %v845
        %v847 = vpop.f32.mrf.mxu0
        %v848 = vadd.f32 %v799, %v847
        %849 = vmatmul.bf16.gmra.mxu0 %v568
        %v850 = vpop.f32.mrf.mxu0
        %v851 = vadd.f32 %v802, %v850
        %v852 = vpop.f32.mrf.mxu0
        %v853 = vadd.f32 %v804, %v852
        %854 = vmatmul.bf16.gmra.mxu0 %v570
        %v855 = vpop.f32.mrf.mxu0
        %v856 = vadd.f32 %v807, %v855
        %v857 = vpop.f32.mrf.mxu0
        %v858 = vadd.f32 %v809, %v857
        %859 = vmatmul.bf16.gmra.mxu0 %v572
        %v860 = vpop.f32.mrf.mxu0
        %v861 = vadd.f32 %v812, %v860
        %v862 = vpop.f32.mrf.mxu0
        %v863 = vadd.f32 %v814, %v862
        %864 = vmatmul.bf16.gmra.mxu0 %v574
        %v865 = vpop.f32.mrf.mxu0
        %v866 = vadd.f32 %v817, %v865
        %v867 = vpop.f32.mrf.mxu0
        %v868 = vadd.f32 %v819, %v867
        %869 = vdwg.mxu0
        %870 = vmatpush.bf16.msra.mxu0 %v723
        %871 = vmatpush.bf16.msra.mxu0 %v721
        %872 = vmatpush.bf16.msra.mxu0 %v719
        %873 = vmatpush.bf16.msra.mxu0 %v717
        %874 = vmatpush.bf16.msra.mxu0 %v715
        %875 = vmatpush.bf16.msra.mxu0 %v713
        %876 = vmatpush.bf16.msra.mxu0 %v711
        %877 = vmatpush.bf16.msra.mxu0 %v709
        %878 = vmatmul.bf16.gmra.mxu0 %v559
        %v879 = vpop.f32.mrf.mxu0
        %v880 = vadd.f32 %v609, %v879
        %v881 = vpop.f32.mrf.mxu0
        %v882 = vadd.f32 %v609, %v881
        %883 = vmatmul.bf16.gmra.mxu0 %v561
        %v884 = vpop.f32.mrf.mxu0
        %v885 = vadd.f32 %v609, %v884
        %v886 = vpop.f32.mrf.mxu0
        %v887 = vadd.f32 %v609, %v886
        %888 = vmatmul.bf16.gmra.mxu0 %v563
        %v889 = vpop.f32.mrf.mxu0
        %v890 = vadd.f32 %v609, %v889
        %v891 = vpop.f32.mrf.mxu0
        %v892 = vadd.f32 %v609, %v891
        %893 = vmatmul.bf16.gmra.mxu0 %v565
        %v894 = vpop.f32.mrf.mxu0
        %v895 = vadd.f32 %v609, %v894
        %v896 = vpop.f32.mrf.mxu0
        %v897 = vadd.f32 %v609, %v896
        %898 = vmatmul.bf16.gmra.mxu0 %v567
        %v899 = vpop.f32.mrf.mxu0
        %v900 = vadd.f32 %v609, %v899
        %v901 = vpop.f32.mrf.mxu0
        %v902 = vadd.f32 %v609, %v901
        %903 = vmatmul.bf16.gmra.mxu0 %v569
        %v904 = vpop.f32.mrf.mxu0
        %v905 = vadd.f32 %v609, %v904
        %v906 = vpop.f32.mrf.mxu0
        %v907 = vadd.f32 %v609, %v906
        %908 = vmatmul.bf16.gmra.mxu0 %v571
        %v909 = vpop.f32.mrf.mxu0
        %v910 = vadd.f32 %v609, %v909
        %v911 = vpop.f32.mrf.mxu0
        %v912 = vadd.f32 %v609, %v911
        %913 = vmatmul.bf16.gmra.mxu0 %v573
        %v914 = vpop.f32.mrf.mxu0
        %v915 = vadd.f32 %v609, %v914
        %v916 = vpop.f32.mrf.mxu0
        %v917 = vadd.f32 %v609, %v916
        %918 = vdwg.mxu0
        %919 = vmatpush.bf16.msra.mxu0 %v739
        %920 = vmatpush.bf16.msra.mxu0 %v737
        %921 = vmatpush.bf16.msra.mxu0 %v735
        %922 = vmatpush.bf16.msra.mxu0 %v733
        %923 = vmatpush.bf16.msra.mxu0 %v731
        %924 = vmatpush.bf16.msra.mxu0 %v729
        %925 = vmatpush.bf16.msra.mxu0 %v727
        %926 = vmatpush.bf16.msra.mxu0 %v725
        %927 = vmatmul.bf16.gmra.mxu0 %v560
        %v928 = vpop.f32.mrf.mxu0
        %v929 = vadd.f32 %v880, %v928
        %v930 = vpop.f32.mrf.mxu0
        %v931 = vadd.f32 %v882, %v930
        %932 = vmatmul.bf16.gmra.mxu0 %v562
        %v933 = vpop.f32.mrf.mxu0
        %v934 = vadd.f32 %v885, %v933
        %v935 = vpop.f32.mrf.mxu0
        %v936 = vadd.f32 %v887, %v935
        %937 = vmatmul.bf16.gmra.mxu0 %v564
        %v938 = vpop.f32.mrf.mxu0
        %v939 = vadd.f32 %v890, %v938
        %v940 = vpop.f32.mrf.mxu0
        %v941 = vadd.f32 %v892, %v940
        %942 = vmatmul.bf16.gmra.mxu0 %v566
        %v943 = vpop.f32.mrf.mxu0
        %v944 = vadd.f32 %v895, %v943
        %v945 = vpop.f32.mrf.mxu0
        %v946 = vadd.f32 %v897, %v945
        %947 = vmatmul.bf16.gmra.mxu0 %v568
        %v948 = vpop.f32.mrf.mxu0
        %v949 = vadd.f32 %v900, %v948
        %v950 = vpop.f32.mrf.mxu0
        %v951 = vadd.f32 %v902, %v950
        %952 = vmatmul.bf16.gmra.mxu0 %v570
        %v953 = vpop.f32.mrf.mxu0
        %v954 = vadd.f32 %v905, %v953
        %v955 = vpop.f32.mrf.mxu0
        %v956 = vadd.f32 %v907, %v955
        %957 = vmatmul.bf16.gmra.mxu0 %v572
        %v958 = vpop.f32.mrf.mxu0
        %v959 = vadd.f32 %v910, %v958
        %v960 = vpop.f32.mrf.mxu0
        %v961 = vadd.f32 %v912, %v960
        %962 = vmatmul.bf16.gmra.mxu0 %v574
        %v963 = vpop.f32.mrf.mxu0
        %v964 = vadd.f32 %v915, %v963
        %v965 = vpop.f32.mrf.mxu0
        %v966 = vadd.f32 %v917, %v965
        %967 = vdwg.mxu0
        %v968 = vtanh.pop %v831
        %v969 = vtanh.pop %v929
        %v970 = vtanh.pop %v833
        %v971 = vtanh.pop %v931
        %v972 = vtanh.pop %v836
        %v973 = vtanh.pop %v934
        %v974 = vtanh.pop %v838
        %v975 = vtanh.pop %v936
        %v976 = vtanh.pop %v841
        %v977 = vtanh.pop %v939
        %v978 = vtanh.pop %v843
        %v979 = vtanh.pop %v941
        %v980 = vtanh.pop %v846
        %v981 = vtanh.pop %v944
        %v982 = vtanh.pop %v848
        %v983 = vtanh.pop %v946
        %v984 = vtanh.pop %v851
        %v985 = vtanh.pop %v949
        %v986 = vtanh.pop %v853
        %v987 = vtanh.pop %v951
        %v988 = vtanh.pop %v856
        %v989 = vtanh.pop %v954
        %v990 = vtanh.pop %v858
        %v991 = vtanh.pop %v956
        %v992 = vtanh.pop %v861
        %v993 = vtanh.pop %v959
        %v994 = vtanh.pop %v863
        %v995 = vtanh.pop %v961
        %v996 = vtanh.pop %v866
        %v997 = vtanh.pop %v964
        %v998 = vtanh.pop %v868
        %v999 = vtanh.pop %v966
        %v1000 = vpack.c.bf16 %v970, %v968
        %v1001 = vpack.c.bf16 %v971, %v969
        %v1002 = vpack.c.bf16 %v974, %v972
        %v1003 = vpack.c.bf16 %v975, %v973
        %v1004 = vpack.c.bf16 %v978, %v976
        %v1005 = vpack.c.bf16 %v979, %v977
        %v1006 = vpack.c.bf16 %v982, %v980
        %v1007 = vpack.c.bf16 %v983, %v981
        %v1008 = vpack.c.bf16 %v986, %v984
        %v1009 = vpack.c.bf16 %v987, %v985
        %v1010 = vpack.c.bf16 %v990, %v988
        %v1011 = vpack.c.bf16 %v991, %v989
        %v1012 = vpack.c.bf16 %v994, %v992
        %v1013 = vpack.c.bf16 %v995, %v993
        %v1014 = vpack.c.bf16 %v998, %v996
        %v1015 = vpack.c.bf16 %v999, %v997
        %v1016 = vld [vmem:[%s4] sm:$0xf]
        %v1017 = vld [vmem:[%s4 + $0x4] sm:$0xf]
        %v1018 = vld [vmem:[%s4 + $0x8] sm:$0xf]
        %v1019 = vld [vmem:[%s4 + $0xc] sm:$0xf]
        %v1020 = vld [vmem:[%s4 + $0x10] sm:$0xf]
        %v1021 = vld [vmem:[%s4 + $0x14] sm:$0xf]
        %v1022 = vld [vmem:[%s4 + $0x18] sm:$0xf]
        %v1023 = vld [vmem:[%s4 + $0x1c] sm:$0xf]
        %v1024 = vld [vmem:[%s4 + $0x20] sm:$0xf]
        %v1025 = vld [vmem:[%s4 + $0x24] sm:$0xf]
        %v1026 = vld [vmem:[%s4 + $0x28] sm:$0xf]
        %v1027 = vld [vmem:[%s4 + $0x2c] sm:$0xf]
        %v1028 = vld [vmem:[%s4 + $0x30] sm:$0xf]
        %v1029 = vld [vmem:[%s4 + $0x34] sm:$0xf]
        %v1030 = vld [vmem:[%s4 + $0x38] sm:$0xf]
        %v1031 = vld [vmem:[%s4 + $0x3c] sm:$0xf]
        %v1032 = vld [vmem:[%s4 + $0x40] sm:$0xf]
        %v1033 = vld [vmem:[%s4 + $0x44] sm:$0xf]
        %v1034 = vld [vmem:[%s4 + $0x48] sm:$0xf]
        %v1035 = vld [vmem:[%s4 + $0x4c] sm:$0xf]
        %v1036 = vld [vmem:[%s4 + $0x50] sm:$0xf]
        %v1037 = vld [vmem:[%s4 + $0x54] sm:$0xf]
        %v1038 = vld [vmem:[%s4 + $0x58] sm:$0xf]
        %v1039 = vld [vmem:[%s4 + $0x5c] sm:$0xf]
        %v1040 = vld [vmem:[%s4 + $0x60] sm:$0xf]
        %v1041 = vld [vmem:[%s4 + $0x64] sm:$0xf]
        %v1042 = vld [vmem:[%s4 + $0x68] sm:$0xf]
        %v1043 = vld [vmem:[%s4 + $0x6c] sm:$0xf]
        %v1044 = vld [vmem:[%s4 + $0x70] sm:$0xf]
        %v1045 = vld [vmem:[%s4 + $0x74] sm:$0xf]
        %v1046 = vld [vmem:[%s4 + $0x78] sm:$0xf]
        %v1047 = vld [vmem:[%s4 + $0x7c] sm:$0xf]
        %v1049 = vperm.slane %v330, 0
        %v1083 = vunpack.c.l.b16 %v1016
        %v1084 = vunpack.c.l.b16 %v1017
        %v1085 = vunpack.c.l.b16 %v1018
        %v1086 = vunpack.c.l.b16 %v1019
        %v1087 = vunpack.c.l.b16 %v1020
        %v1088 = vunpack.c.l.b16 %v1021
        %v1089 = vunpack.c.l.b16 %v1022
        %v1090 = vunpack.c.l.b16 %v1023
        %v1091 = vunpack.c.l.b16 %v1024
        %v1092 = vunpack.c.l.b16 %v1025
        %v1093 = vunpack.c.l.b16 %v1026
        %v1094 = vunpack.c.l.b16 %v1027
        %v1095 = vunpack.c.l.b16 %v1028
        %v1096 = vunpack.c.l.b16 %v1029
        %v1097 = vunpack.c.l.b16 %v1030
        %v1098 = vunpack.c.l.b16 %v1031
        %v1099 = vunpack.c.l.b16 %v1032
        %v1100 = vunpack.c.l.b16 %v1033
        %v1101 = vunpack.c.l.b16 %v1034
        %v1102 = vunpack.c.l.b16 %v1035
        %v1103 = vunpack.c.l.b16 %v1036
        %v1104 = vunpack.c.l.b16 %v1037
        %v1105 = vunpack.c.l.b16 %v1038
        %v1106 = vunpack.c.l.b16 %v1039
        %v1107 = vunpack.c.l.b16 %v1040
        %v1108 = vunpack.c.l.b16 %v1041
        %v1109 = vunpack.c.l.b16 %v1042
        %v1110 = vunpack.c.l.b16 %v1043
        %v1111 = vunpack.c.l.b16 %v1044
        %v1112 = vunpack.c.l.b16 %v1045
        %v1113 = vunpack.c.l.b16 %v1046
        %v1114 = vunpack.c.l.b16 %v1047
        %v1115 = vpack.c.b16 %v1084, %v1083
        %v1116 = vpack.c.b16 %v1086, %v1085
        %v1117 = vpack.c.b16 %v1088, %v1087
        %v1118 = vpack.c.b16 %v1090, %v1089
        %v1119 = vpack.c.b16 %v1092, %v1091
        %v1120 = vpack.c.b16 %v1094, %v1093
        %v1121 = vpack.c.b16 %v1096, %v1095
        %v1122 = vpack.c.b16 %v1098, %v1097
        %v1123 = vpack.c.b16 %v1100, %v1099
        %v1124 = vpack.c.b16 %v1102, %v1101
        %v1125 = vpack.c.b16 %v1104, %v1103
        %v1126 = vpack.c.b16 %v1106, %v1105
        %v1127 = vpack.c.b16 %v1108, %v1107
        %v1128 = vpack.c.b16 %v1110, %v1109
        %v1129 = vpack.c.b16 %v1112, %v1111
        %v1130 = vpack.c.b16 %v1114, %v1113
        %1147 = vmatpush.bf16.msra.mxu0 %v1122
        %1148 = vmatpush.bf16.msra.mxu0 %v1121
        %1149 = vmatpush.bf16.msra.mxu0 %v1120
        %1150 = vmatpush.bf16.msra.mxu0 %v1119
        %1151 = vmatpush.bf16.msra.mxu0 %v1118
        %1152 = vmatpush.bf16.msra.mxu0 %v1117
        %1153 = vmatpush.bf16.msra.mxu0 %v1116
        %1154 = vmatpush.bf16.msra.mxu0 %v1115
        %1155 = vmatmul.bf16.gmra.mxu0 %v1000
        %v1156 = vpop.f32.mrf.mxu0
        %v1157 = vadd.f32 %v1049, %v1156
        %v1158 = vpop.f32.mrf.mxu0
        %v1159 = vadd.f32 %v1049, %v1158
        %1160 = vmatmul.bf16.gmra.mxu0 %v1002
        %v1161 = vpop.f32.mrf.mxu0
        %v1162 = vadd.f32 %v1049, %v1161
        %v1163 = vpop.f32.mrf.mxu0
        %v1164 = vadd.f32 %v1049, %v1163
        %1165 = vmatmul.bf16.gmra.mxu0 %v1004
        %v1166 = vpop.f32.mrf.mxu0
        %v1167 = vadd.f32 %v1049, %v1166
        %v1168 = vpop.f32.mrf.mxu0
        %v1169 = vadd.f32 %v1049, %v1168
        %1170 = vmatmul.bf16.gmra.mxu0 %v1006
        %v1171 = vpop.f32.mrf.mxu0
        %v1172 = vadd.f32 %v1049, %v1171
        %v1173 = vpop.f32.mrf.mxu0
        %v1174 = vadd.f32 %v1049, %v1173
        %1175 = vmatmul.bf16.gmra.mxu0 %v1008
        %v1176 = vpop.f32.mrf.mxu0
        %v1177 = vadd.f32 %v1049, %v1176
        %v1178 = vpop.f32.mrf.mxu0
        %v1179 = vadd.f32 %v1049, %v1178
        %1180 = vmatmul.bf16.gmra.mxu0 %v1010
        %v1181 = vpop.f32.mrf.mxu0
        %v1182 = vadd.f32 %v1049, %v1181
        %v1183 = vpop.f32.mrf.mxu0
        %v1184 = vadd.f32 %v1049, %v1183
        %1185 = vmatmul.bf16.gmra.mxu0 %v1012
        %v1186 = vpop.f32.mrf.mxu0
        %v1187 = vadd.f32 %v1049, %v1186
        %v1188 = vpop.f32.mrf.mxu0
        %v1189 = vadd.f32 %v1049, %v1188
        %1190 = vmatmul.bf16.gmra.mxu0 %v1014
        %v1191 = vpop.f32.mrf.mxu0
        %v1192 = vadd.f32 %v1049, %v1191
        %v1193 = vpop.f32.mrf.mxu0
        %v1194 = vadd.f32 %v1049, %v1193
        %1195 = vdwg.mxu0
        %1196 = vmatpush.bf16.msra.mxu0 %v1130
        %1197 = vmatpush.bf16.msra.mxu0 %v1129
        %1198 = vmatpush.bf16.msra.mxu0 %v1128
        %1199 = vmatpush.bf16.msra.mxu0 %v1127
        %1200 = vmatpush.bf16.msra.mxu0 %v1126
        %1201 = vmatpush.bf16.msra.mxu0 %v1125
        %1202 = vmatpush.bf16.msra.mxu0 %v1124
        %1203 = vmatpush.bf16.msra.mxu0 %v1123
        %1204 = vmatmul.bf16.gmra.mxu0 %v1001
        %v1205 = vpop.f32.mrf.mxu0
        %v1206 = vadd.f32 %v1157, %v1205
        %v1207 = vpop.f32.mrf.mxu0
        %v1208 = vadd.f32 %v1159, %v1207
        %1209 = vmatmul.bf16.gmra.mxu0 %v1003
        %v1210 = vpop.f32.mrf.mxu0
        %v1211 = vadd.f32 %v1162, %v1210
        %v1212 = vpop.f32.mrf.mxu0
        %v1213 = vadd.f32 %v1164, %v1212
        %1214 = vmatmul.bf16.gmra.mxu0 %v1005
        %v1215 = vpop.f32.mrf.mxu0
        %v1216 = vadd.f32 %v1167, %v1215
        %v1217 = vpop.f32.mrf.mxu0
        %v1218 = vadd.f32 %v1169, %v1217
        %1219 = vmatmul.bf16.gmra.mxu0 %v1007
        %v1220 = vpop.f32.mrf.mxu0
        %v1221 = vadd.f32 %v1172, %v1220
        %v1222 = vpop.f32.mrf.mxu0
        %v1223 = vadd.f32 %v1174, %v1222
        %1224 = vmatmul.bf16.gmra.mxu0 %v1009
        %v1225 = vpop.f32.mrf.mxu0
        %v1226 = vadd.f32 %v1177, %v1225
        %v1227 = vpop.f32.mrf.mxu0
        %v1228 = vadd.f32 %v1179, %v1227
        %1229 = vmatmul.bf16.gmra.mxu0 %v1011
        %v1230 = vpop.f32.mrf.mxu0
        %v1231 = vadd.f32 %v1182, %v1230
        %v1232 = vpop.f32.mrf.mxu0
        %v1233 = vadd.f32 %v1184, %v1232
        %1234 = vmatmul.bf16.gmra.mxu0 %v1013
        %v1235 = vpop.f32.mrf.mxu0
        %v1236 = vadd.f32 %v1187, %v1235
        %v1237 = vpop.f32.mrf.mxu0
        %v1238 = vadd.f32 %v1189, %v1237
        %1239 = vmatmul.bf16.gmra.mxu0 %v1015
        %v1240 = vpop.f32.mrf.mxu0
        %v1241 = vadd.f32 %v1192, %v1240
        %v1242 = vpop.f32.mrf.mxu0
        %v1243 = vadd.f32 %v1194, %v1242
        %1244 = vdwg.mxu0
        %v1245 = vlaneseq
        %v1246 = vand.u32 %v1245, 127
        %vm1247 = vcmp.lt.s32.totalorder %v1246, 8
        %v1248 = vsel %vm1247, %v1206, -1e+30
        %v1249 = vsel %vm1247, %v1208, -1e+30
        %v1250 = vsel %vm1247, %v1211, -1e+30
        %v1251 = vsel %vm1247, %v1213, -1e+30
        %v1252 = vsel %vm1247, %v1216, -1e+30
        %v1253 = vsel %vm1247, %v1218, -1e+30
        %v1254 = vsel %vm1247, %v1221, -1e+30
        %v1255 = vsel %vm1247, %v1223, -1e+30
        %v1256 = vsel %vm1247, %v1226, -1e+30
        %v1257 = vsel %vm1247, %v1228, -1e+30
        %v1258 = vsel %vm1247, %v1231, -1e+30
        %v1259 = vsel %vm1247, %v1233, -1e+30
        %v1260 = vsel %vm1247, %v1236, -1e+30
        %v1261 = vsel %vm1247, %v1238, -1e+30
        %v1262 = vsel %vm1247, %v1241, -1e+30
        %v1263 = vsel %vm1247, %v1243, -1e+30
        %1264 = vmax.xlane.f32.xlu0 %v1248
        %v1265 = vpop.xlane.xlu0 %1264
        %1266 = vmax.xlane.f32.xlu0 %v1249
        %v1267 = vpop.xlane.xlu0 %1266
        %1268 = vmax.xlane.f32.xlu0 %v1250
        %v1269 = vpop.xlane.xlu0 %1268
        %1270 = vmax.xlane.f32.xlu0 %v1251
        %v1271 = vpop.xlane.xlu0 %1270
        %1272 = vmax.xlane.f32.xlu0 %v1252
        %v1273 = vpop.xlane.xlu0 %1272
        %1274 = vmax.xlane.f32.xlu0 %v1253
        %v1275 = vpop.xlane.xlu0 %1274
        %1276 = vmax.xlane.f32.xlu0 %v1254
        %v1277 = vpop.xlane.xlu0 %1276
        %1278 = vmax.xlane.f32.xlu0 %v1255
        %v1279 = vpop.xlane.xlu0 %1278
        %1280 = vmax.xlane.f32.xlu0 %v1256
        %v1281 = vpop.xlane.xlu0 %1280
        %1282 = vmax.xlane.f32.xlu0 %v1257
        %v1283 = vpop.xlane.xlu0 %1282
        %1284 = vmax.xlane.f32.xlu0 %v1258
        %v1285 = vpop.xlane.xlu0 %1284
        %1286 = vmax.xlane.f32.xlu0 %v1259
        %v1287 = vpop.xlane.xlu0 %1286
        %1288 = vmax.xlane.f32.xlu0 %v1260
        %v1289 = vpop.xlane.xlu0 %1288
        %1290 = vmax.xlane.f32.xlu0 %v1261
        %v1291 = vpop.xlane.xlu0 %1290
        %1292 = vmax.xlane.f32.xlu0 %v1262
        %v1293 = vpop.xlane.xlu0 %1292
        %1294 = vmax.xlane.f32.xlu0 %v1263
        %v1295 = vpop.xlane.xlu0 %1294
        %v1296 = vsub.f32 %v1248, %v1265
        %v1297 = vsub.f32 %v1249, %v1267
        %v1298 = vsub.f32 %v1250, %v1269
        %v1299 = vsub.f32 %v1251, %v1271
        %v1300 = vsub.f32 %v1252, %v1273
        %v1301 = vsub.f32 %v1253, %v1275
        %v1302 = vsub.f32 %v1254, %v1277
        %v1303 = vsub.f32 %v1255, %v1279
        %v1304 = vsub.f32 %v1256, %v1281
        %v1305 = vsub.f32 %v1257, %v1283
        %v1306 = vsub.f32 %v1258, %v1285
        %v1307 = vsub.f32 %v1259, %v1287
        %v1308 = vsub.f32 %v1260, %v1289
        %v1309 = vsub.f32 %v1261, %v1291
        %v1310 = vsub.f32 %v1262, %v1293
        %v1311 = vsub.f32 %v1263, %v1295
        %v1312 = vmul.f32 %v1296, 1.442695
        %v1313 = vpow.pop %v1312
        %v1314 = vmul.f32 %v1297, 1.442695
        %v1315 = vpow.pop %v1314
        %v1316 = vmul.f32 %v1298, 1.442695
        %v1317 = vpow.pop %v1316
        %v1318 = vmul.f32 %v1299, 1.442695
        %v1319 = vpow.pop %v1318
        %v1320 = vmul.f32 %v1300, 1.442695
        %v1321 = vpow.pop %v1320
        %v1322 = vmul.f32 %v1301, 1.442695
        %v1323 = vpow.pop %v1322
        %v1324 = vmul.f32 %v1302, 1.442695
        %v1325 = vpow.pop %v1324
        %v1326 = vmul.f32 %v1303, 1.442695
        %v1327 = vpow.pop %v1326
        %v1328 = vmul.f32 %v1304, 1.442695
        %v1329 = vpow.pop %v1328
        %v1330 = vmul.f32 %v1305, 1.442695
        %v1331 = vpow.pop %v1330
        %v1332 = vmul.f32 %v1306, 1.442695
        %v1333 = vpow.pop %v1332
        %v1334 = vmul.f32 %v1307, 1.442695
        %v1335 = vpow.pop %v1334
        %v1336 = vmul.f32 %v1308, 1.442695
        %v1337 = vpow.pop %v1336
        %v1338 = vmul.f32 %v1309, 1.442695
        %v1339 = vpow.pop %v1338
        %v1340 = vmul.f32 %v1310, 1.442695
        %v1341 = vpow.pop %v1340
        %v1342 = vmul.f32 %v1311, 1.442695
        %v1343 = vpow.pop %v1342
        %1344 = vadd.xlane.f32.xlu0 %v1313
        %v1345 = vpop.xlane.xlu0 %1344
        %1346 = vadd.xlane.f32.xlu0 %v1315
        %v1347 = vpop.xlane.xlu0 %1346
        %1348 = vadd.xlane.f32.xlu0 %v1317
        %v1349 = vpop.xlane.xlu0 %1348
        %1350 = vadd.xlane.f32.xlu0 %v1319
        %v1351 = vpop.xlane.xlu0 %1350
        %1352 = vadd.xlane.f32.xlu0 %v1321
        %v1353 = vpop.xlane.xlu0 %1352
        %1354 = vadd.xlane.f32.xlu0 %v1323
        %v1355 = vpop.xlane.xlu0 %1354
        %1356 = vadd.xlane.f32.xlu0 %v1325
        %v1357 = vpop.xlane.xlu0 %1356
        %1358 = vadd.xlane.f32.xlu0 %v1327
        %v1359 = vpop.xlane.xlu0 %1358
        %1360 = vadd.xlane.f32.xlu0 %v1329
        %v1361 = vpop.xlane.xlu0 %1360
        %1362 = vadd.xlane.f32.xlu0 %v1331
        %v1363 = vpop.xlane.xlu0 %1362
        %1364 = vadd.xlane.f32.xlu0 %v1333
        %v1365 = vpop.xlane.xlu0 %1364
        %1366 = vadd.xlane.f32.xlu0 %v1335
        %v1367 = vpop.xlane.xlu0 %1366
        %1368 = vadd.xlane.f32.xlu0 %v1337
        %v1369 = vpop.xlane.xlu0 %1368
        %1370 = vadd.xlane.f32.xlu0 %v1339
        %v1371 = vpop.xlane.xlu0 %1370
        %1372 = vadd.xlane.f32.xlu0 %v1341
        %v1373 = vpop.xlane.xlu0 %1372
        %1374 = vadd.xlane.f32.xlu0 %v1343
        %v1375 = vpop.xlane.xlu0 %1374
        %v1376 = vlog2.pop %v1345
        %v1377 = vmul.f32 %v1376, 0.6931472
        %v1378 = vlog2.pop %v1347
        %v1379 = vmul.f32 %v1378, 0.6931472
        %v1380 = vlog2.pop %v1349
        %v1381 = vmul.f32 %v1380, 0.6931472
        %v1382 = vlog2.pop %v1351
        %v1383 = vmul.f32 %v1382, 0.6931472
        %v1384 = vlog2.pop %v1353
        %v1385 = vmul.f32 %v1384, 0.6931472
        %v1386 = vlog2.pop %v1355
        %v1387 = vmul.f32 %v1386, 0.6931472
        %v1388 = vlog2.pop %v1357
        %v1389 = vmul.f32 %v1388, 0.6931472
        %v1390 = vlog2.pop %v1359
        %v1391 = vmul.f32 %v1390, 0.6931472
        %v1392 = vlog2.pop %v1361
        %v1393 = vmul.f32 %v1392, 0.6931472
        %v1394 = vlog2.pop %v1363
        %v1395 = vmul.f32 %v1394, 0.6931472
        %v1396 = vlog2.pop %v1365
        %v1397 = vmul.f32 %v1396, 0.6931472
        %v1398 = vlog2.pop %v1367
        %v1399 = vmul.f32 %v1398, 0.6931472
        %v1400 = vlog2.pop %v1369
        %v1401 = vmul.f32 %v1400, 0.6931472
        %v1402 = vlog2.pop %v1371
        %v1403 = vmul.f32 %v1402, 0.6931472
        %v1404 = vlog2.pop %v1373
        %v1405 = vmul.f32 %v1404, 0.6931472
        %v1406 = vlog2.pop %v1375
        %v1407 = vmul.f32 %v1406, 0.6931472
        %v1408 = vld [vmem:[%s274] sm:$0xff]
        %v1409 = vld [vmem:[%s274 + $0x8] sm:$0xff]
        %v1410 = vld [vmem:[%s274 + $0x10] sm:$0xff]
        %v1411 = vld [vmem:[%s274 + $0x18] sm:$0xff]
        %v1412 = vld [vmem:[%s274 + $0x20] sm:$0xff]
        %v1413 = vld [vmem:[%s274 + $0x28] sm:$0xff]
        %v1414 = vld [vmem:[%s274 + $0x30] sm:$0xff]
        %v1415 = vld [vmem:[%s274 + $0x38] sm:$0xff]
        %v1416 = vld [vmem:[%s274 + $0x40] sm:$0xff]
        %v1417 = vld [vmem:[%s274 + $0x48] sm:$0xff]
        %v1418 = vld [vmem:[%s274 + $0x50] sm:$0xff]
        %v1419 = vld [vmem:[%s274 + $0x58] sm:$0xff]
        %v1420 = vld [vmem:[%s274 + $0x60] sm:$0xff]
        %v1421 = vld [vmem:[%s274 + $0x68] sm:$0xff]
        %v1422 = vld [vmem:[%s274 + $0x70] sm:$0xff]
        %v1423 = vld [vmem:[%s274 + $0x78] sm:$0xff]
        %v1424 = vadd.f32 %v1248, %v1408
        %v1425 = vadd.f32 %v1249, %v1409
        %v1426 = vadd.f32 %v1250, %v1410
        %v1427 = vadd.f32 %v1251, %v1411
        %v1428 = vadd.f32 %v1252, %v1412
        %v1429 = vadd.f32 %v1253, %v1413
        %v1430 = vadd.f32 %v1254, %v1414
        %v1431 = vadd.f32 %v1255, %v1415
        %v1432 = vadd.f32 %v1256, %v1416
        %v1433 = vadd.f32 %v1257, %v1417
        %v1434 = vadd.f32 %v1258, %v1418
        %v1435 = vadd.f32 %v1259, %v1419
        %v1436 = vadd.f32 %v1260, %v1420
        %v1437 = vadd.f32 %v1261, %v1421
        %v1438 = vadd.f32 %v1262, %v1422
        %v1439 = vadd.f32 %v1263, %v1423
        %v1440 = vsel %vm1247, %v1424, -1e+30
        %v1441 = vsel %vm1247, %v1425, -1e+30
        %v1442 = vsel %vm1247, %v1426, -1e+30
        %v1443 = vsel %vm1247, %v1427, -1e+30
        %v1444 = vsel %vm1247, %v1428, -1e+30
        %v1445 = vsel %vm1247, %v1429, -1e+30
        %v1446 = vsel %vm1247, %v1430, -1e+30
        %v1447 = vsel %vm1247, %v1431, -1e+30
        %v1448 = vsel %vm1247, %v1432, -1e+30
        %v1449 = vsel %vm1247, %v1433, -1e+30
        %v1450 = vsel %vm1247, %v1434, -1e+30
        %v1451 = vsel %vm1247, %v1435, -1e+30
        %v1452 = vsel %vm1247, %v1436, -1e+30
        %v1453 = vsel %vm1247, %v1437, -1e+30
        %v1454 = vsel %vm1247, %v1438, -1e+30
        %v1455 = vsel %vm1247, %v1439, -1e+30
        %1456 = vmax.xlane.f32.xlu0 %v1440
        %v1457 = vpop.xlane.xlu0 %1456
        %1458 = vmax.xlane.f32.xlu0 %v1441
        %v1459 = vpop.xlane.xlu0 %1458
        %1460 = vmax.xlane.f32.xlu0 %v1442
        %v1461 = vpop.xlane.xlu0 %1460
        %1462 = vmax.xlane.f32.xlu0 %v1443
        %v1463 = vpop.xlane.xlu0 %1462
        %1464 = vmax.xlane.f32.xlu0 %v1444
        %v1465 = vpop.xlane.xlu0 %1464
        %1466 = vmax.xlane.f32.xlu0 %v1445
        %v1467 = vpop.xlane.xlu0 %1466
        %1468 = vmax.xlane.f32.xlu0 %v1446
        %v1469 = vpop.xlane.xlu0 %1468
        %1470 = vmax.xlane.f32.xlu0 %v1447
        %v1471 = vpop.xlane.xlu0 %1470
        %1472 = vmax.xlane.f32.xlu0 %v1448
        %v1473 = vpop.xlane.xlu0 %1472
        %1474 = vmax.xlane.f32.xlu0 %v1449
        %v1475 = vpop.xlane.xlu0 %1474
        %1476 = vmax.xlane.f32.xlu0 %v1450
        %v1477 = vpop.xlane.xlu0 %1476
        %1478 = vmax.xlane.f32.xlu0 %v1451
        %v1479 = vpop.xlane.xlu0 %1478
        %1480 = vmax.xlane.f32.xlu0 %v1452
        %v1481 = vpop.xlane.xlu0 %1480
        %1482 = vmax.xlane.f32.xlu0 %v1453
        %v1483 = vpop.xlane.xlu0 %1482
        %1484 = vmax.xlane.f32.xlu0 %v1454
        %v1485 = vpop.xlane.xlu0 %1484
        %1486 = vmax.xlane.f32.xlu0 %v1455
        %v1487 = vpop.xlane.xlu0 %1486
        %vm1488 = vcmp.eq.f32.partialorder %v1440, %v1457
        %vm1489 = vcmp.eq.f32.partialorder %v1441, %v1459
        %vm1490 = vcmp.eq.f32.partialorder %v1442, %v1461
        %vm1491 = vcmp.eq.f32.partialorder %v1443, %v1463
        %vm1492 = vcmp.eq.f32.partialorder %v1444, %v1465
        %vm1493 = vcmp.eq.f32.partialorder %v1445, %v1467
        %vm1494 = vcmp.eq.f32.partialorder %v1446, %v1469
        %vm1495 = vcmp.eq.f32.partialorder %v1447, %v1471
        %vm1496 = vcmp.eq.f32.partialorder %v1448, %v1473
        %vm1497 = vcmp.eq.f32.partialorder %v1449, %v1475
        %vm1498 = vcmp.eq.f32.partialorder %v1450, %v1477
        %vm1499 = vcmp.eq.f32.partialorder %v1451, %v1479
        %vm1500 = vcmp.eq.f32.partialorder %v1452, %v1481
        %vm1501 = vcmp.eq.f32.partialorder %v1453, %v1483
        %vm1502 = vcmp.eq.f32.partialorder %v1454, %v1485
        %vm1503 = vcmp.eq.f32.partialorder %v1455, %v1487
        %v1504 = vsel %vm1488, %v1246, 128
        %v1505 = vsel %vm1489, %v1246, 128
        %v1506 = vsel %vm1490, %v1246, 128
        %v1507 = vsel %vm1491, %v1246, 128
        %v1508 = vsel %vm1492, %v1246, 128
        %v1509 = vsel %vm1493, %v1246, 128
        %v1510 = vsel %vm1494, %v1246, 128
        %v1511 = vsel %vm1495, %v1246, 128
        %v1512 = vsel %vm1496, %v1246, 128
        %v1513 = vsel %vm1497, %v1246, 128
        %v1514 = vsel %vm1498, %v1246, 128
        %v1515 = vsel %vm1499, %v1246, 128
        %v1516 = vsel %vm1500, %v1246, 128
        %v1517 = vsel %vm1501, %v1246, 128
        %v1518 = vsel %vm1502, %v1246, 128
        %v1519 = vsel %vm1503, %v1246, 128
        %v1520 = vand.u32 %v1504, 65535
        %v1521 = vshra.s32 %v1504, 16
        %v1522 = vcvt.s32.f32 %v1520
        %v1523 = vcvt.s32.f32 %v1521
        %1524 = vmin.xlane.f32.xlu0 %v1523
        %v1525 = vpop.xlane.xlu0 %1524
        %vm1526 = vcmp.eq.f32.partialorder %v1523, %v1525
        %v1527 = vsel %vm1526, %v1522, inf
        %1528 = vmin.xlane.f32.xlu0 %v1527
        %v1529 = vpop.xlane.xlu0 %1528
        %v1530 = vcvt.f32.s32 %v1529
        %v1531 = vcvt.f32.s32 %v1525
        %v1532 = vshll.u32 %v1531, 16
        %v1533 = vadd.s32 %v1532, %v1530
        %v1534 = vand.u32 %v1505, 65535
        %v1535 = vshra.s32 %v1505, 16
        %v1536 = vcvt.s32.f32 %v1534
        %v1537 = vcvt.s32.f32 %v1535
        %1538 = vmin.xlane.f32.xlu0 %v1537
        %v1539 = vpop.xlane.xlu0 %1538
        %vm1540 = vcmp.eq.f32.partialorder %v1537, %v1539
        %v1541 = vsel %vm1540, %v1536, inf
        %1542 = vmin.xlane.f32.xlu0 %v1541
        %v1543 = vpop.xlane.xlu0 %1542
        %v1544 = vcvt.f32.s32 %v1543
        %v1545 = vcvt.f32.s32 %v1539
        %v1546 = vshll.u32 %v1545, 16
        %v1547 = vadd.s32 %v1546, %v1544
        %v1548 = vand.u32 %v1506, 65535
        %v1549 = vshra.s32 %v1506, 16
        %v1550 = vcvt.s32.f32 %v1548
        %v1551 = vcvt.s32.f32 %v1549
        %1552 = vmin.xlane.f32.xlu0 %v1551
        %v1553 = vpop.xlane.xlu0 %1552
        %vm1554 = vcmp.eq.f32.partialorder %v1551, %v1553
        %v1555 = vsel %vm1554, %v1550, inf
        %1556 = vmin.xlane.f32.xlu0 %v1555
        %v1557 = vpop.xlane.xlu0 %1556
        %v1558 = vcvt.f32.s32 %v1557
        %v1559 = vcvt.f32.s32 %v1553
        %v1560 = vshll.u32 %v1559, 16
        %v1561 = vadd.s32 %v1560, %v1558
        %v1562 = vand.u32 %v1507, 65535
        %v1563 = vshra.s32 %v1507, 16
        %v1564 = vcvt.s32.f32 %v1562
        %v1565 = vcvt.s32.f32 %v1563
        %1566 = vmin.xlane.f32.xlu0 %v1565
        %v1567 = vpop.xlane.xlu0 %1566
        %vm1568 = vcmp.eq.f32.partialorder %v1565, %v1567
        %v1569 = vsel %vm1568, %v1564, inf
        %1570 = vmin.xlane.f32.xlu0 %v1569
        %v1571 = vpop.xlane.xlu0 %1570
        %v1572 = vcvt.f32.s32 %v1571
        %v1573 = vcvt.f32.s32 %v1567
        %v1574 = vshll.u32 %v1573, 16
        %v1575 = vadd.s32 %v1574, %v1572
        %v1576 = vand.u32 %v1508, 65535
        %v1577 = vshra.s32 %v1508, 16
        %v1578 = vcvt.s32.f32 %v1576
        %v1579 = vcvt.s32.f32 %v1577
        %1580 = vmin.xlane.f32.xlu0 %v1579
        %v1581 = vpop.xlane.xlu0 %1580
        %vm1582 = vcmp.eq.f32.partialorder %v1579, %v1581
        %v1583 = vsel %vm1582, %v1578, inf
        %1584 = vmin.xlane.f32.xlu0 %v1583
        %v1585 = vpop.xlane.xlu0 %1584
        %v1586 = vcvt.f32.s32 %v1585
        %v1587 = vcvt.f32.s32 %v1581
        %v1588 = vshll.u32 %v1587, 16
        %v1589 = vadd.s32 %v1588, %v1586
        %v1590 = vand.u32 %v1509, 65535
        %v1591 = vshra.s32 %v1509, 16
        %v1592 = vcvt.s32.f32 %v1590
        %v1593 = vcvt.s32.f32 %v1591
        %1594 = vmin.xlane.f32.xlu0 %v1593
        %v1595 = vpop.xlane.xlu0 %1594
        %vm1596 = vcmp.eq.f32.partialorder %v1593, %v1595
        %v1597 = vsel %vm1596, %v1592, inf
        %1598 = vmin.xlane.f32.xlu0 %v1597
        %v1599 = vpop.xlane.xlu0 %1598
        %v1600 = vcvt.f32.s32 %v1599
        %v1601 = vcvt.f32.s32 %v1595
        %v1602 = vshll.u32 %v1601, 16
        %v1603 = vadd.s32 %v1602, %v1600
        %v1604 = vand.u32 %v1510, 65535
        %v1605 = vshra.s32 %v1510, 16
        %v1606 = vcvt.s32.f32 %v1604
        %v1607 = vcvt.s32.f32 %v1605
        %1608 = vmin.xlane.f32.xlu0 %v1607
        %v1609 = vpop.xlane.xlu0 %1608
        %vm1610 = vcmp.eq.f32.partialorder %v1607, %v1609
        %v1611 = vsel %vm1610, %v1606, inf
        %1612 = vmin.xlane.f32.xlu0 %v1611
        %v1613 = vpop.xlane.xlu0 %1612
        %v1614 = vcvt.f32.s32 %v1613
        %v1615 = vcvt.f32.s32 %v1609
        %v1616 = vshll.u32 %v1615, 16
        %v1617 = vadd.s32 %v1616, %v1614
        %v1618 = vand.u32 %v1511, 65535
        %v1619 = vshra.s32 %v1511, 16
        %v1620 = vcvt.s32.f32 %v1618
        %v1621 = vcvt.s32.f32 %v1619
        %1622 = vmin.xlane.f32.xlu0 %v1621
        %v1623 = vpop.xlane.xlu0 %1622
        %vm1624 = vcmp.eq.f32.partialorder %v1621, %v1623
        %v1625 = vsel %vm1624, %v1620, inf
        %1626 = vmin.xlane.f32.xlu0 %v1625
        %v1627 = vpop.xlane.xlu0 %1626
        %v1628 = vcvt.f32.s32 %v1627
        %v1629 = vcvt.f32.s32 %v1623
        %v1630 = vshll.u32 %v1629, 16
        %v1631 = vadd.s32 %v1630, %v1628
        %v1632 = vand.u32 %v1512, 65535
        %v1633 = vshra.s32 %v1512, 16
        %v1634 = vcvt.s32.f32 %v1632
        %v1635 = vcvt.s32.f32 %v1633
        %1636 = vmin.xlane.f32.xlu0 %v1635
        %v1637 = vpop.xlane.xlu0 %1636
        %vm1638 = vcmp.eq.f32.partialorder %v1635, %v1637
        %v1639 = vsel %vm1638, %v1634, inf
        %1640 = vmin.xlane.f32.xlu0 %v1639
        %v1641 = vpop.xlane.xlu0 %1640
        %v1642 = vcvt.f32.s32 %v1641
        %v1643 = vcvt.f32.s32 %v1637
        %v1644 = vshll.u32 %v1643, 16
        %v1645 = vadd.s32 %v1644, %v1642
        %v1646 = vand.u32 %v1513, 65535
        %v1647 = vshra.s32 %v1513, 16
        %v1648 = vcvt.s32.f32 %v1646
        %v1649 = vcvt.s32.f32 %v1647
        %1650 = vmin.xlane.f32.xlu0 %v1649
        %v1651 = vpop.xlane.xlu0 %1650
        %vm1652 = vcmp.eq.f32.partialorder %v1649, %v1651
        %v1653 = vsel %vm1652, %v1648, inf
        %1654 = vmin.xlane.f32.xlu0 %v1653
        %v1655 = vpop.xlane.xlu0 %1654
        %v1656 = vcvt.f32.s32 %v1655
        %v1657 = vcvt.f32.s32 %v1651
        %v1658 = vshll.u32 %v1657, 16
        %v1659 = vadd.s32 %v1658, %v1656
        %v1660 = vand.u32 %v1514, 65535
        %v1661 = vshra.s32 %v1514, 16
        %v1662 = vcvt.s32.f32 %v1660
        %v1663 = vcvt.s32.f32 %v1661
        %1664 = vmin.xlane.f32.xlu0 %v1663
        %v1665 = vpop.xlane.xlu0 %1664
        %vm1666 = vcmp.eq.f32.partialorder %v1663, %v1665
        %v1667 = vsel %vm1666, %v1662, inf
        %1668 = vmin.xlane.f32.xlu0 %v1667
        %v1669 = vpop.xlane.xlu0 %1668
        %v1670 = vcvt.f32.s32 %v1669
        %v1671 = vcvt.f32.s32 %v1665
        %v1672 = vshll.u32 %v1671, 16
        %v1673 = vadd.s32 %v1672, %v1670
        %v1674 = vand.u32 %v1515, 65535
        %v1675 = vshra.s32 %v1515, 16
        %v1676 = vcvt.s32.f32 %v1674
        %v1677 = vcvt.s32.f32 %v1675
        %1678 = vmin.xlane.f32.xlu0 %v1677
        %v1679 = vpop.xlane.xlu0 %1678
        %vm1680 = vcmp.eq.f32.partialorder %v1677, %v1679
        %v1681 = vsel %vm1680, %v1676, inf
        %1682 = vmin.xlane.f32.xlu0 %v1681
        %v1683 = vpop.xlane.xlu0 %1682
        %v1684 = vcvt.f32.s32 %v1683
        %v1685 = vcvt.f32.s32 %v1679
        %v1686 = vshll.u32 %v1685, 16
        %v1687 = vadd.s32 %v1686, %v1684
        %v1688 = vand.u32 %v1516, 65535
        %v1689 = vshra.s32 %v1516, 16
        %v1690 = vcvt.s32.f32 %v1688
        %v1691 = vcvt.s32.f32 %v1689
        %1692 = vmin.xlane.f32.xlu0 %v1691
        %v1693 = vpop.xlane.xlu0 %1692
        %vm1694 = vcmp.eq.f32.partialorder %v1691, %v1693
        %v1695 = vsel %vm1694, %v1690, inf
        %1696 = vmin.xlane.f32.xlu0 %v1695
        %v1697 = vpop.xlane.xlu0 %1696
        %v1698 = vcvt.f32.s32 %v1697
        %v1699 = vcvt.f32.s32 %v1693
        %v1700 = vshll.u32 %v1699, 16
        %v1701 = vadd.s32 %v1700, %v1698
        %v1702 = vand.u32 %v1517, 65535
        %v1703 = vshra.s32 %v1517, 16
        %v1704 = vcvt.s32.f32 %v1702
        %v1705 = vcvt.s32.f32 %v1703
        %1706 = vmin.xlane.f32.xlu0 %v1705
        %v1707 = vpop.xlane.xlu0 %1706
        %vm1708 = vcmp.eq.f32.partialorder %v1705, %v1707
        %v1709 = vsel %vm1708, %v1704, inf
        %1710 = vmin.xlane.f32.xlu0 %v1709
        %v1711 = vpop.xlane.xlu0 %1710
        %v1712 = vcvt.f32.s32 %v1711
        %v1713 = vcvt.f32.s32 %v1707
        %v1714 = vshll.u32 %v1713, 16
        %v1715 = vadd.s32 %v1714, %v1712
        %v1716 = vand.u32 %v1518, 65535
        %v1717 = vshra.s32 %v1518, 16
        %v1718 = vcvt.s32.f32 %v1716
        %v1719 = vcvt.s32.f32 %v1717
        %1720 = vmin.xlane.f32.xlu0 %v1719
        %v1721 = vpop.xlane.xlu0 %1720
        %vm1722 = vcmp.eq.f32.partialorder %v1719, %v1721
        %v1723 = vsel %vm1722, %v1718, inf
        %1724 = vmin.xlane.f32.xlu0 %v1723
        %v1725 = vpop.xlane.xlu0 %1724
        %v1726 = vcvt.f32.s32 %v1725
        %v1727 = vcvt.f32.s32 %v1721
        %v1728 = vshll.u32 %v1727, 16
        %v1729 = vadd.s32 %v1728, %v1726
        %v1730 = vand.u32 %v1519, 65535
        %v1731 = vshra.s32 %v1519, 16
        %v1732 = vcvt.s32.f32 %v1730
        %v1733 = vcvt.s32.f32 %v1731
        %1734 = vmin.xlane.f32.xlu0 %v1733
        %v1735 = vpop.xlane.xlu0 %1734
        %vm1736 = vcmp.eq.f32.partialorder %v1733, %v1735
        %v1737 = vsel %vm1736, %v1732, inf
        %1738 = vmin.xlane.f32.xlu0 %v1737
        %v1739 = vpop.xlane.xlu0 %1738
        %v1740 = vcvt.f32.s32 %v1739
        %v1741 = vcvt.f32.s32 %v1735
        %v1742 = vshll.u32 %v1741, 16
        %v1743 = vadd.s32 %v1742, %v1740
        %vm1744 = vcmp.eq.s32.totalorder %v1246, %v1533
        %vm1745 = vcmp.eq.s32.totalorder %v1246, %v1547
        %vm1746 = vcmp.eq.s32.totalorder %v1246, %v1561
        %vm1747 = vcmp.eq.s32.totalorder %v1246, %v1575
        %vm1748 = vcmp.eq.s32.totalorder %v1246, %v1589
        %vm1749 = vcmp.eq.s32.totalorder %v1246, %v1603
        %vm1750 = vcmp.eq.s32.totalorder %v1246, %v1617
        %vm1751 = vcmp.eq.s32.totalorder %v1246, %v1631
        %vm1752 = vcmp.eq.s32.totalorder %v1246, %v1645
        %vm1753 = vcmp.eq.s32.totalorder %v1246, %v1659
        %vm1754 = vcmp.eq.s32.totalorder %v1246, %v1673
        %vm1755 = vcmp.eq.s32.totalorder %v1246, %v1687
        %vm1756 = vcmp.eq.s32.totalorder %v1246, %v1701
        %vm1757 = vcmp.eq.s32.totalorder %v1246, %v1715
        %vm1758 = vcmp.eq.s32.totalorder %v1246, %v1729
        %vm1759 = vcmp.eq.s32.totalorder %v1246, %v1743
        %v1760 = vsel %vm1744, %v1296, 0.0
        %v1761 = vsel %vm1745, %v1297, 0.0
        %v1762 = vsel %vm1746, %v1298, 0.0
        %v1763 = vsel %vm1747, %v1299, 0.0
        %v1764 = vsel %vm1748, %v1300, 0.0
        %v1765 = vsel %vm1749, %v1301, 0.0
        %v1766 = vsel %vm1750, %v1302, 0.0
        %v1767 = vsel %vm1751, %v1303, 0.0
        %v1768 = vsel %vm1752, %v1304, 0.0
        %v1769 = vsel %vm1753, %v1305, 0.0
        %v1770 = vsel %vm1754, %v1306, 0.0
        %v1771 = vsel %vm1755, %v1307, 0.0
        %v1772 = vsel %vm1756, %v1308, 0.0
        %v1773 = vsel %vm1757, %v1309, 0.0
        %v1774 = vsel %vm1758, %v1310, 0.0
        %v1775 = vsel %vm1759, %v1311, 0.0
        %1776 = vadd.xlane.f32.xlu0 %v1760
        %v1777 = vpop.xlane.xlu0 %1776
        %1778 = vadd.xlane.f32.xlu0 %v1761
        %v1779 = vpop.xlane.xlu0 %1778
        %1780 = vadd.xlane.f32.xlu0 %v1762
        %v1781 = vpop.xlane.xlu0 %1780
        %1782 = vadd.xlane.f32.xlu0 %v1763
        %v1783 = vpop.xlane.xlu0 %1782
        %1784 = vadd.xlane.f32.xlu0 %v1764
        %v1785 = vpop.xlane.xlu0 %1784
        %1786 = vadd.xlane.f32.xlu0 %v1765
        %v1787 = vpop.xlane.xlu0 %1786
        %1788 = vadd.xlane.f32.xlu0 %v1766
        %v1789 = vpop.xlane.xlu0 %1788
        %1790 = vadd.xlane.f32.xlu0 %v1767
        %v1791 = vpop.xlane.xlu0 %1790
        %1792 = vadd.xlane.f32.xlu0 %v1768
        %v1793 = vpop.xlane.xlu0 %1792
        %1794 = vadd.xlane.f32.xlu0 %v1769
        %v1795 = vpop.xlane.xlu0 %1794
        %1796 = vadd.xlane.f32.xlu0 %v1770
        %v1797 = vpop.xlane.xlu0 %1796
        %1798 = vadd.xlane.f32.xlu0 %v1771
        %v1799 = vpop.xlane.xlu0 %1798
        %1800 = vadd.xlane.f32.xlu0 %v1772
        %v1801 = vpop.xlane.xlu0 %1800
        %1802 = vadd.xlane.f32.xlu0 %v1773
        %v1803 = vpop.xlane.xlu0 %1802
        %1804 = vadd.xlane.f32.xlu0 %v1774
        %v1805 = vpop.xlane.xlu0 %1804
        %1806 = vadd.xlane.f32.xlu0 %v1775
        %v1807 = vpop.xlane.xlu0 %1806
        %v1808 = vsub.f32 %v1777, %v1377
        %v1809 = vsub.f32 %v1779, %v1379
        %v1810 = vsub.f32 %v1781, %v1381
        %v1811 = vsub.f32 %v1783, %v1383
        %v1812 = vsub.f32 %v1785, %v1385
        %v1813 = vsub.f32 %v1787, %v1387
        %v1814 = vsub.f32 %v1789, %v1389
        %v1815 = vsub.f32 %v1791, %v1391
        %v1816 = vsub.f32 %v1793, %v1393
        %v1817 = vsub.f32 %v1795, %v1395
        %v1818 = vsub.f32 %v1797, %v1397
        %v1819 = vsub.f32 %v1799, %v1399
        %v1820 = vsub.f32 %v1801, %v1401
        %v1821 = vsub.f32 %v1803, %v1403
        %v1822 = vsub.f32 %v1805, %v1405
        %v1823 = vsub.f32 %v1807, %v1407
        %vm1824 = vcmp.eq.s32.totalorder %v1246, 8
        %v1825 = vsel %vm1824, %v1206, 0.0
        %v1826 = vsel %vm1824, %v1208, 0.0
        %v1827 = vsel %vm1824, %v1211, 0.0
        %v1828 = vsel %vm1824, %v1213, 0.0
        %v1829 = vsel %vm1824, %v1216, 0.0
        %v1830 = vsel %vm1824, %v1218, 0.0
        %v1831 = vsel %vm1824, %v1221, 0.0
        %v1832 = vsel %vm1824, %v1223, 0.0
        %v1833 = vsel %vm1824, %v1226, 0.0
        %v1834 = vsel %vm1824, %v1228, 0.0
        %v1835 = vsel %vm1824, %v1231, 0.0
        %v1836 = vsel %vm1824, %v1233, 0.0
        %v1837 = vsel %vm1824, %v1236, 0.0
        %v1838 = vsel %vm1824, %v1238, 0.0
        %v1839 = vsel %vm1824, %v1241, 0.0
        %v1840 = vsel %vm1824, %v1243, 0.0
        %1841 = vadd.xlane.f32.xlu0 %v1825
        %v1842 = vpop.xlane.xlu0 %1841
        %1843 = vadd.xlane.f32.xlu0 %v1826
        %v1844 = vpop.xlane.xlu0 %1843
        %1845 = vadd.xlane.f32.xlu0 %v1827
        %v1846 = vpop.xlane.xlu0 %1845
        %1847 = vadd.xlane.f32.xlu0 %v1828
        %v1848 = vpop.xlane.xlu0 %1847
        %1849 = vadd.xlane.f32.xlu0 %v1829
        %v1850 = vpop.xlane.xlu0 %1849
        %1851 = vadd.xlane.f32.xlu0 %v1830
        %v1852 = vpop.xlane.xlu0 %1851
        %1853 = vadd.xlane.f32.xlu0 %v1831
        %v1854 = vpop.xlane.xlu0 %1853
        %1855 = vadd.xlane.f32.xlu0 %v1832
        %v1856 = vpop.xlane.xlu0 %1855
        %1857 = vadd.xlane.f32.xlu0 %v1833
        %v1858 = vpop.xlane.xlu0 %1857
        %1859 = vadd.xlane.f32.xlu0 %v1834
        %v1860 = vpop.xlane.xlu0 %1859
        %1861 = vadd.xlane.f32.xlu0 %v1835
        %v1862 = vpop.xlane.xlu0 %1861
        %1863 = vadd.xlane.f32.xlu0 %v1836
        %v1864 = vpop.xlane.xlu0 %1863
        %1865 = vadd.xlane.f32.xlu0 %v1837
        %v1866 = vpop.xlane.xlu0 %1865
        %1867 = vadd.xlane.f32.xlu0 %v1838
        %v1868 = vpop.xlane.xlu0 %1867
        %1869 = vadd.xlane.f32.xlu0 %v1839
        %v1870 = vpop.xlane.xlu0 %1869
        %1871 = vadd.xlane.f32.xlu0 %v1840
        %v1872 = vpop.xlane.xlu0 %1871
        %v1873 = vcvt.s32.f32 %v1533
        %v1874 = vcvt.s32.f32 %v1547
        %v1875 = vcvt.s32.f32 %v1561
        %v1876 = vcvt.s32.f32 %v1575
        %v1877 = vcvt.s32.f32 %v1589
        %v1878 = vcvt.s32.f32 %v1603
        %v1879 = vcvt.s32.f32 %v1617
        %v1880 = vcvt.s32.f32 %v1631
        %v1881 = vcvt.s32.f32 %v1645
        %v1882 = vcvt.s32.f32 %v1659
        %v1883 = vcvt.s32.f32 %v1673
        %v1884 = vcvt.s32.f32 %v1687
        %v1885 = vcvt.s32.f32 %v1701
        %v1886 = vcvt.s32.f32 %v1715
        %v1887 = vcvt.s32.f32 %v1729
        %v1888 = vcvt.s32.f32 %v1743
        %vm1889 = vcmp.eq.s32.totalorder %v1246, 0
        %vm1890 = vcmp.eq.s32.totalorder %v1246, 1
        %vm1891 = vcmp.eq.s32.totalorder %v1246, 2
        %v1892 = vsel %vm1891, %v1808, 0.0
        %v1893 = vsel %vm1891, %v1809, 0.0
        %v1894 = vsel %vm1891, %v1810, 0.0
        %v1895 = vsel %vm1891, %v1811, 0.0
        %v1896 = vsel %vm1891, %v1812, 0.0
        %v1897 = vsel %vm1891, %v1813, 0.0
        %v1898 = vsel %vm1891, %v1814, 0.0
        %v1899 = vsel %vm1891, %v1815, 0.0
        %v1900 = vsel %vm1891, %v1816, 0.0
        %v1901 = vsel %vm1891, %v1817, 0.0
        %v1902 = vsel %vm1891, %v1818, 0.0
        %v1903 = vsel %vm1891, %v1819, 0.0
        %v1904 = vsel %vm1891, %v1820, 0.0
        %v1905 = vsel %vm1891, %v1821, 0.0
        %v1906 = vsel %vm1891, %v1822, 0.0
        %v1907 = vsel %vm1891, %v1823, 0.0
        %v1908 = vsel %vm1890, %v1842, %v1892
        %v1909 = vsel %vm1890, %v1844, %v1893
        %v1910 = vsel %vm1890, %v1846, %v1894
        %v1911 = vsel %vm1890, %v1848, %v1895
        %v1912 = vsel %vm1890, %v1850, %v1896
        %v1913 = vsel %vm1890, %v1852, %v1897
        %v1914 = vsel %vm1890, %v1854, %v1898
        %v1915 = vsel %vm1890, %v1856, %v1899
        %v1916 = vsel %vm1890, %v1858, %v1900
        %v1917 = vsel %vm1890, %v1860, %v1901
        %v1918 = vsel %vm1890, %v1862, %v1902
        %v1919 = vsel %vm1890, %v1864, %v1903
        %v1920 = vsel %vm1890, %v1866, %v1904
        %v1921 = vsel %vm1890, %v1868, %v1905
        %v1922 = vsel %vm1890, %v1870, %v1906
        %v1923 = vsel %vm1890, %v1872, %v1907
        %v1924 = vsel %vm1889, %v1873, %v1908
        %v1925 = vsel %vm1889, %v1874, %v1909
        %v1926 = vsel %vm1889, %v1875, %v1910
        %v1927 = vsel %vm1889, %v1876, %v1911
        %v1928 = vsel %vm1889, %v1877, %v1912
        %v1929 = vsel %vm1889, %v1878, %v1913
        %v1930 = vsel %vm1889, %v1879, %v1914
        %v1931 = vsel %vm1889, %v1880, %v1915
        %v1932 = vsel %vm1889, %v1881, %v1916
        %v1933 = vsel %vm1889, %v1882, %v1917
        %v1934 = vsel %vm1889, %v1883, %v1918
        %v1935 = vsel %vm1889, %v1884, %v1919
        %v1936 = vsel %vm1889, %v1885, %v1920
        %v1937 = vsel %vm1889, %v1886, %v1921
        %v1938 = vsel %vm1889, %v1887, %v1922
        %v1939 = vsel %vm1889, %v1888, %v1923
        %1940 = vst [vmem:[%s318] sm:$0xff] %v1924
        %1941 = vst [vmem:[%s318 + $0x8] sm:$0xff] %v1925
        %1942 = vst [vmem:[%s318 + $0x10] sm:$0xff] %v1926
        %1943 = vst [vmem:[%s318 + $0x18] sm:$0xff] %v1927
        %1944 = vst [vmem:[%s318 + $0x20] sm:$0xff] %v1928
        %1945 = vst [vmem:[%s318 + $0x28] sm:$0xff] %v1929
        %1946 = vst [vmem:[%s318 + $0x30] sm:$0xff] %v1930
        %1947 = vst [vmem:[%s318 + $0x38] sm:$0xff] %v1931
        %1948 = vst [vmem:[%s318 + $0x40] sm:$0xff] %v1932
        %1949 = vst [vmem:[%s318 + $0x48] sm:$0xff] %v1933
        %1950 = vst [vmem:[%s318 + $0x50] sm:$0xff] %v1934
        %1951 = vst [vmem:[%s318 + $0x58] sm:$0xff] %v1935
        %1952 = vst [vmem:[%s318 + $0x60] sm:$0xff] %v1936
        %1953 = vst [vmem:[%s318 + $0x68] sm:$0xff] %v1937
        %1954 = vst [vmem:[%s318 + $0x70] sm:$0xff] %v1938
        %1955 = vst [vmem:[%s318 + $0x78] sm:$0xff] %v1939
        %s1956 = sand.u32 %s168, 1
        %s1957 = scalar_lea.sflag [#allocation4], %s1956
        %s1958 = sand.u32 %s168, 1
        %s1959 = smul.addr %s1958, 128
        %s1960 = scalar_lea.vmem [#allocation8], %s1959
        // Predicated region
        $region57: #{tpu_custom_call.1} parent=43 // pred_check
          %p1961 = pneg %p178
        $region58: #{tpu_custom_call.1} parent=43 // pred_check_branch
          %1963 = sbr.rel (%p1961) target = $region60
        $region59: #{tpu_custom_call.1} parent=43 // pred_region
          %s1964 = smul.u32 16, %s24
          %1966 = vsyncadd %s1957, 0
          %s1967 = smul.addr %s1964, 8
          %s1968 = scalar_lea.hbm %s6, %s1967
          %s1969 = sshll.u32 %s1960, 4
          %s1970 = int_to_ptr.vmem [resolvable:$true] %s1969
          %s1971 = sshll.u32 %s1968, 4
          %s1972 = int_to_ptr.hbm [resolvable:$true] %s1971
          %1977 = dma.vmem_to_hbm [thread:$0]  %s1970, 2048, %s1972, %s1957, 128, 128, 8
        $region60: #{tpu_custom_call.1} parent=43 // pred_fallthru
          _
      $region44: #{tpu_custom_call.1} parent=5 // pred_fallthru
        _
      %p1978 = scmp.le.s32.totalorder 2, %s19
      // Predicated region
      $region61: #{tpu_custom_call.1} parent=5 // pred_check
        %p1979 = pneg %p1978
      $region62: #{tpu_custom_call.1} parent=5 // pred_check_branch
        %1981 = sbr.rel (%p1979) target = $region64
      $region63: #{tpu_custom_call.1} parent=5 // pred_region
        %s1982 = ssub.s32 %s19, 2
        // Predicated region
        $region65: #{tpu_custom_call.1} parent=63 // pred_check
          %p1983 = pneg %p184
        $region66: #{tpu_custom_call.1} parent=63 // pred_check_branch
          %1985 = sbr.rel (%p1983) target = $region68
        $region67: #{tpu_custom_call.1} parent=63 // pred_region
          %s1986 = sand.u32 %s169, 1
          %s1987 = scalar_lea.sflag [#allocation4], %s1986
          %s1988 = sand.u32 %s169, 1
          %s1989 = smul.addr %s1988, 128
          %s1990 = scalar_lea.vmem [#allocation8], %s1989
          %1992 = dma.done %s1987, 2048
        $region68: #{tpu_custom_call.1} parent=63 // pred_fallthru
          _
      $region64: #{tpu_custom_call.1} parent=5 // pred_fallthru
        _
    $region6: #{tpu_custom_call.1} parent=1 // loop_footer
      %s23 = sadd.s32 1, %s19
    $region7: #{tpu_custom_call.1} parent=1 // loop_footer_branch
      %18 = sbr.rel target = $region3
    $region8: #{tpu_custom_call.1} parent=1 // loop_exit
      _
    %1993 = vsyncpa [#allocation3], 1
    %s1994 = scalar_lea.sflag [#allocation3], 1
    %1995 = vsyncpa %s1994, 1
    %1996 = vsyncpa [#allocation6], 1
    %1997 = vsyncpa [#allocation4], 1
    %s1998 = scalar_lea.sflag [#allocation4], 1
    %1999 = vsyncpa %s1998, 1

</llo_original>
